<compile_context>
chip_gen: v7x
topology: tpu7x:2x2x1
jax: 0.10.0
libtpu: 0.0.40
codegen_flags: <defaults>
</compile_context>

<pallas_src>
import math

import jax
import jax.numpy as jnp
import numpy as np
from jax import lax
from jax.experimental import pallas as pl
from jax.experimental.pallas import tpu as pltpu


def _gru_fused_kernel(x_ref, wih_ref, whh_ref, bgi_ref, bhn_ref, out_ref):
    """Fused single-layer GRU forward (whole sequence in one invocation).

    x_ref   : (B, T, F)   batch-first input, resident in VMEM
    wih_ref : (F, 3H)     concatenated input->hidden weights (gate order r,z,n)
    whh_ref : (H, 3H)     concatenated hidden->hidden weights (gate order r,z,n)
    bgi_ref : (1, 3H)     [b_ir+b_hr, b_iz+b_hz, b_in] (folds into input proj)
    bhn_ref : (1, H)      b_hn (must stay inside r * (h@W_hn + b_hn))
    out_ref : (B, T, H)   full output slab (single dense writeback store)
    """
    B, T, F = x_ref.shape
    H3 = wih_ref.shape[-1]
    H = H3 // 3

    # ---- Hoisted input projection: ONE matmul over all gates & timesteps ----
    x2d = x_ref[...].reshape(B * T, F)                       # (B*T, F)
    gi = jnp.dot(x2d, wih_ref[...],
                 preferred_element_type=jnp.float32) + bgi_ref[...]
    gi = gi.reshape(B, T, H3)                                # (B, T, 3H)
    gi_r = gi[:, :, 0:H]                                     # static lane slices
    gi_z = gi[:, :, H:2 * H]
    gi_n = gi[:, :, 2 * H:3 * H]

    whh = whh_ref[...]                                       # (H, 3H) resident
    b_hn = bhn_ref[...]                                      # (1, H)

    # ---- Sequential recurrence, fully unrolled (T is static and small) ----
    h = jnp.zeros((B, H), jnp.float32)                       # torch default h0 = 0
    hs = []
    for t in range(T):
        if t == 0:
            # h_prev == 0: the hidden->hidden matmul is identically zero.
            r = jax.nn.sigmoid(gi_r[:, t, :])
            z = jax.nn.sigmoid(gi_z[:, t, :])
            n = jnp.tanh(gi_n[:, t, :] + r * b_hn)
            h = n - z * n                                    # == (1 - z) * n
        else:
            # ONE fused MXU push per step: (B, H) @ (H, 3H).
            gh = jnp.dot(h, whh, preferred_element_type=jnp.float32)  # (B, 3H)
            r = jax.nn.sigmoid(gi_r[:, t, :] + gh[:, 0:H])
            z = jax.nn.sigmoid(gi_z[:, t, :] + gh[:, H:2 * H])
            n = jnp.tanh(gi_n[:, t, :] + r * (gh[:, 2 * H:3 * H] + b_hn))
            h = n + z * (h - n)                              # == (1-z)*n + z*h
        hs.append(h)

    # ---- Single lane/sublane-dense writeback (no per-step masked stores) ----
    out_ref[...] = jnp.stack(hs, axis=1).astype(out_ref.dtype)   # (B, T, H)


def gru_encoder_forward(x_btf, w_ih, w_hh, b_ih, b_hh):
    """Encoder.forward: X (B, T, F) -> rnn_out (B, T, H).

    w_ih: (3H, F), w_hh: (3H, H), b_ih/b_hh: (3H,) with torch gate order r,z,n.
    """
    B, T, F = x_btf.shape
    H3 = w_ih.shape[0]
    H = H3 // 3

    w_ih = jnp.asarray(w_ih, jnp.float32)
    w_hh = jnp.asarray(w_hh, jnp.float32)
    b_ih = jnp.asarray(b_ih, jnp.float32)
    b_hh = jnp.asarray(b_hh, jnp.float32)

    # Concatenated, pre-transposed weights (tiny, parameters only — no
    # activation-tensor transposes).  Torch layout (3H, F) / (3H, H) with gate
    # order r,z,n along the leading axis, so a plain transpose gives (F, 3H) /
    # (H, 3H) with the gates in r,z,n lane order.
    wih_cat = w_ih.T                                   # (F, 3H)
    whh_cat = w_hh.T                                   # (H, 3H)

    # Bias folding: r and z gate biases fold fully; the n gate's input-side
    # bias folds, but b_hn must stay separate (inside r * (h@W_hn + b_hn)).
    bgi = jnp.concatenate(
        [b_ih[0:H] + b_hh[0:H],
         b_ih[H:2 * H] + b_hh[H:2 * H],
         b_ih[2 * H:3 * H]], axis=0).reshape(1, 3 * H)  # (1, 3H)
    bhn = b_hh[2 * H:3 * H].reshape(1, H)               # (1, H)

    x = x_btf.astype(jnp.float32)

    vmem = pltpu.MemorySpace.VMEM
    out = pl.pallas_call(
        _gru_fused_kernel,
        out_shape=jax.ShapeDtypeStruct((B, T, H), jnp.float32),
        in_specs=[
            pl.BlockSpec(memory_space=vmem),   # x        (B, T, F)
            pl.BlockSpec(memory_space=vmem),   # W_ih^T   (F, 3H)
            pl.BlockSpec(memory_space=vmem),   # W_hh^T   (H, 3H)
            pl.BlockSpec(memory_space=vmem),   # folded gi bias (1, 3H)
            pl.BlockSpec(memory_space=vmem),   # b_hn     (1, H)
        ],
        out_specs=pl.BlockSpec(memory_space=vmem),
    )(x, wih_cat, whh_cat, bgi, bhn)
    return out


def _gru_reference(x_btf, w_ih, w_hh, b_ih, b_hh):
    """Pure-JAX reference matching torch.nn.GRU(batch_first=True), h0 = 0."""
    B, T, F = x_btf.shape
    H = w_hh.shape[1]
    wih_t = w_ih.T
    whh_t = w_hh.T

    def step(h, x_t):
        gi = x_t @ wih_t + b_ih
        gh = h @ whh_t + b_hh
        i_r, i_z, i_n = jnp.split(gi, 3, axis=-1)
        h_r, h_z, h_n = jnp.split(gh, 3, axis=-1)
        r = jax.nn.sigmoid(i_r + h_r)
        z = jax.nn.sigmoid(i_z + h_z)
        n = jnp.tanh(i_n + r * h_n)
        h_new = (1.0 - z) * n + z * h
        return h_new, h_new

    h0 = jnp.zeros((B, H), jnp.float32)
    _, ys = lax.scan(step, h0, jnp.transpose(x_btf, (1, 0, 2)))
    return jnp.transpose(ys, (1, 0, 2))


if __name__ == "__main__":
    # Shapes consistent with the module: batch=2, seq=8, n_features=4, hidden=32.
    B, T, F, H = 2, 8, 4, 32

    key = jax.random.PRNGKey(0)
    kx, k1, k2, k3, k4 = jax.random.split(key, 5)

    # Parameter init mimicking torch.nn.GRU: U(-1/sqrt(H), 1/sqrt(H)).
    bound = 1.0 / math.sqrt(H)
    w_ih = jax.random.uniform(k1, (3 * H, F), jnp.float32, -bound, bound)
    w_hh = jax.random.uniform(k2, (3 * H, H), jnp.float32, -bound, bound)
    b_ih = jax.random.uniform(k3, (3 * H,), jnp.float32, -bound, bound)
    b_hh = jax.random.uniform(k4, (3 * H,), jnp.float32, -bound, bound)

    x = jax.random.normal(kx, (B, T, F), jnp.float32)

    out = gru_encoder_forward(x, w_ih, w_hh, b_ih, b_hh)
    out = jax.block_until_ready(out)

    ref = _gru_reference(x, w_ih, w_hh, b_ih, b_hh)
    np.testing.assert_allclose(np.asarray(out), np.asarray(ref), rtol=1e-5, atol=1e-5)

    print("KERNEL_OK")
</pallas_src>

<mosaic_0001>
module attributes {stable_mosaic.version = 11 : i64} {
  func.func @_gru_fused_kernel(%arg0: memref<2x8x4xf32, #tpu.memory_space<vmem>>, %arg1: memref<4x96xf32, #tpu.memory_space<vmem>>, %arg2: memref<32x96xf32, #tpu.memory_space<vmem>>, %arg3: memref<1x96xf32, #tpu.memory_space<vmem>>, %arg4: memref<1x32xf32, #tpu.memory_space<vmem>>, %arg5: memref<2x8x32xf32, #tpu.memory_space<vmem>>) attributes {dimension_semantics = [], scalar_prefetch = 0 : i64, scratch_operands = 0 : i64, tpu.core_type = #tpu.core_type<tc>} {
    %c0 = arith.constant 0 : index
    %c0_0 = arith.constant 0 : index
    %c0_1 = arith.constant 0 : index
    %0 = vector.load %arg0[%c0, %c0_0, %c0_1] : memref<2x8x4xf32, #tpu.memory_space<vmem>>, vector<2x8x4xf32>
    %1 = vector.shape_cast %0 : vector<2x8x4xf32> to vector<16x4xf32>
    %c0_2 = arith.constant 0 : index
    %c0_3 = arith.constant 0 : index
    %2 = vector.load %arg1[%c0_2, %c0_3] : memref<4x96xf32, #tpu.memory_space<vmem>>, vector<4x96xf32>
    %cst = arith.constant dense<0.000000e+00> : vector<16x96xf32>
    %3 = tpu.matmul %1, %2, %cst {dimension_numbers = #tpu.dot_dimension_numbers<[1], [0], [0], [1], [0, 0, 1, 1], [], []>} : vector<16x4xf32>, vector<4x96xf32>, vector<16x96xf32> -> vector<16x96xf32>
    %c0_4 = arith.constant 0 : index
    %c0_5 = arith.constant 0 : index
    %4 = vector.load %arg3[%c0_4, %c0_5] : memref<1x96xf32, #tpu.memory_space<vmem>>, vector<1x96xf32>
    %5 = vector.broadcast %4 : vector<1x96xf32> to vector<16x96xf32>
    %6 = arith.addf %3, %5 : vector<16x96xf32>
    %7 = vector.shape_cast %6 : vector<16x96xf32> to vector<2x8x96xf32>
    %8 = vector.extract_strided_slice %7 {offsets = [0, 0, 0], sizes = [2, 8, 32], strides = [1, 1, 1]} : vector<2x8x96xf32> to vector<2x8x32xf32>
    %9 = vector.extract_strided_slice %7 {offsets = [0, 0, 32], sizes = [2, 8, 32], strides = [1, 1, 1]} : vector<2x8x96xf32> to vector<2x8x32xf32>
    %10 = vector.extract_strided_slice %7 {offsets = [0, 0, 64], sizes = [2, 8, 32], strides = [1, 1, 1]} : vector<2x8x96xf32> to vector<2x8x32xf32>
    %c0_6 = arith.constant 0 : index
    %c0_7 = arith.constant 0 : index
    %11 = vector.load %arg2[%c0_6, %c0_7] : memref<32x96xf32, #tpu.memory_space<vmem>>, vector<32x96xf32>
    %c0_8 = arith.constant 0 : index
    %c0_9 = arith.constant 0 : index
    %12 = vector.load %arg4[%c0_8, %c0_9] : memref<1x32xf32, #tpu.memory_space<vmem>>, vector<1x32xf32>
    %13 = vector.extract_strided_slice %8 {offsets = [0, 0, 0], sizes = [2, 1, 32], strides = [1, 1, 1]} : vector<2x8x32xf32> to vector<2x1x32xf32>
    %14 = vector.shape_cast %13 : vector<2x1x32xf32> to vector<2x32xf32>
    %15 = arith.negf %14 : vector<2x32xf32>
    %16 = math.exp %15 : vector<2x32xf32>
    %cst_10 = arith.constant 1.000000e+00 : f32
    %17 = vector.broadcast %cst_10 : f32 to vector<2x32xf32>
    %18 = arith.addf %17, %16 : vector<2x32xf32>
    %19 = arith.divf %17, %18 : vector<2x32xf32>
    %20 = vector.extract_strided_slice %9 {offsets = [0, 0, 0], sizes = [2, 1, 32], strides = [1, 1, 1]} : vector<2x8x32xf32> to vector<2x1x32xf32>
    %21 = vector.shape_cast %20 : vector<2x1x32xf32> to vector<2x32xf32>
    %22 = arith.negf %21 : vector<2x32xf32>
    %23 = math.exp %22 : vector<2x32xf32>
    %cst_11 = arith.constant 1.000000e+00 : f32
    %24 = vector.broadcast %cst_11 : f32 to vector<2x32xf32>
    %25 = arith.addf %24, %23 : vector<2x32xf32>
    %26 = arith.divf %24, %25 : vector<2x32xf32>
    %27 = vector.extract_strided_slice %10 {offsets = [0, 0, 0], sizes = [2, 1, 32], strides = [1, 1, 1]} : vector<2x8x32xf32> to vector<2x1x32xf32>
    %28 = vector.shape_cast %27 : vector<2x1x32xf32> to vector<2x32xf32>
    %29 = vector.broadcast %12 : vector<1x32xf32> to vector<2x32xf32>
    %30 = arith.mulf %19, %29 : vector<2x32xf32>
    %31 = arith.addf %28, %30 : vector<2x32xf32>
    %32 = math.tanh %31 : vector<2x32xf32>
    %33 = arith.mulf %26, %32 : vector<2x32xf32>
    %34 = arith.subf %32, %33 : vector<2x32xf32>
    %cst_12 = arith.constant dense<0.000000e+00> : vector<2x96xf32>
    %35 = tpu.matmul %34, %11, %cst_12 {dimension_numbers = #tpu.dot_dimension_numbers<[1], [0], [0], [1], [0, 0, 1, 1], [], []>} : vector<2x32xf32>, vector<32x96xf32>, vector<2x96xf32> -> vector<2x96xf32>
    %36 = vector.extract_strided_slice %8 {offsets = [0, 1, 0], sizes = [2, 1, 32], strides = [1, 1, 1]} : vector<2x8x32xf32> to vector<2x1x32xf32>
    %37 = vector.shape_cast %36 : vector<2x1x32xf32> to vector<2x32xf32>
    %38 = vector.extract_strided_slice %35 {offsets = [0, 0], sizes = [2, 32], strides = [1, 1]} : vector<2x96xf32> to vector<2x32xf32>
    %39 = arith.addf %37, %38 : vector<2x32xf32>
    %40 = arith.negf %39 : vector<2x32xf32>
    %41 = math.exp %40 : vector<2x32xf32>
    %cst_13 = arith.constant 1.000000e+00 : f32
    %42 = vector.broadcast %cst_13 : f32 to vector<2x32xf32>
    %43 = arith.addf %42, %41 : vector<2x32xf32>
    %44 = arith.divf %42, %43 : vector<2x32xf32>
    %45 = vector.extract_strided_slice %9 {offsets = [0, 1, 0], sizes = [2, 1, 32], strides = [1, 1, 1]} : vector<2x8x32xf32> to vector<2x1x32xf32>
    %46 = vector.shape_cast %45 : vector<2x1x32xf32> to vector<2x32xf32>
    %47 = vector.extract_strided_slice %35 {offsets = [0, 32], sizes = [2, 32], strides = [1, 1]} : vector<2x96xf32> to vector<2x32xf32>
    %48 = arith.addf %46, %47 : vector<2x32xf32>
    %49 = arith.negf %48 : vector<2x32xf32>
    %50 = math.exp %49 : vector<2x32xf32>
    %cst_14 = arith.constant 1.000000e+00 : f32
    %51 = vector.broadcast %cst_14 : f32 to vector<2x32xf32>
    %52 = arith.addf %51, %50 : vector<2x32xf32>
    %53 = arith.divf %51, %52 : vector<2x32xf32>
    %54 = vector.extract_strided_slice %10 {offsets = [0, 1, 0], sizes = [2, 1, 32], strides = [1, 1, 1]} : vector<2x8x32xf32> to vector<2x1x32xf32>
    %55 = vector.shape_cast %54 : vector<2x1x32xf32> to vector<2x32xf32>
    %56 = vector.extract_strided_slice %35 {offsets = [0, 64], sizes = [2, 32], strides = [1, 1]} : vector<2x96xf32> to vector<2x32xf32>
    %57 = vector.broadcast %12 : vector<1x32xf32> to vector<2x32xf32>
    %58 = arith.addf %56, %57 : vector<2x32xf32>
    %59 = arith.mulf %44, %58 : vector<2x32xf32>
    %60 = arith.addf %55, %59 : vector<2x32xf32>
    %61 = math.tanh %60 : vector<2x32xf32>
    %62 = arith.subf %34, %61 : vector<2x32xf32>
    %63 = arith.mulf %53, %62 : vector<2x32xf32>
    %64 = arith.addf %61, %63 : vector<2x32xf32>
    %cst_15 = arith.constant dense<0.000000e+00> : vector<2x96xf32>
    %65 = tpu.matmul %64, %11, %cst_15 {dimension_numbers = #tpu.dot_dimension_numbers<[1], [0], [0], [1], [0, 0, 1, 1], [], []>} : vector<2x32xf32>, vector<32x96xf32>, vector<2x96xf32> -> vector<2x96xf32>
    %66 = vector.extract_strided_slice %8 {offsets = [0, 2, 0], sizes = [2, 1, 32], strides = [1, 1, 1]} : vector<2x8x32xf32> to vector<2x1x32xf32>
    %67 = vector.shape_cast %66 : vector<2x1x32xf32> to vector<2x32xf32>
    %68 = vector.extract_strided_slice %65 {offsets = [0, 0], sizes = [2, 32], strides = [1, 1]} : vector<2x96xf32> to vector<2x32xf32>
    %69 = arith.addf %67, %68 : vector<2x32xf32>
    %70 = arith.negf %69 : vector<2x32xf32>
    %71 = math.exp %70 : vector<2x32xf32>
    %cst_16 = arith.constant 1.000000e+00 : f32
    %72 = vector.broadcast %cst_16 : f32 to vector<2x32xf32>
    %73 = arith.addf %72, %71 : vector<2x32xf32>
    %74 = arith.divf %72, %73 : vector<2x32xf32>
    %75 = vector.extract_strided_slice %9 {offsets = [0, 2, 0], sizes = [2, 1, 32], strides = [1, 1, 1]} : vector<2x8x32xf32> to vector<2x1x32xf32>
    %76 = vector.shape_cast %75 : vector<2x1x32xf32> to vector<2x32xf32>
    %77 = vector.extract_strided_slice %65 {offsets = [0, 32], sizes = [2, 32], strides = [1, 1]} : vector<2x96xf32> to vector<2x32xf32>
    %78 = arith.addf %76, %77 : vector<2x32xf32>
    %79 = arith.negf %78 : vector<2x32xf32>
    %80 = math.exp %79 : vector<2x32xf32>
    %cst_17 = arith.constant 1.000000e+00 : f32
    %81 = vector.broadcast %cst_17 : f32 to vector<2x32xf32>
    %82 = arith.addf %81, %80 : vector<2x32xf32>
    %83 = arith.divf %81, %82 : vector<2x32xf32>
    %84 = vector.extract_strided_slice %10 {offsets = [0, 2, 0], sizes = [2, 1, 32], strides = [1, 1, 1]} : vector<2x8x32xf32> to vector<2x1x32xf32>
    %85 = vector.shape_cast %84 : vector<2x1x32xf32> to vector<2x32xf32>
    %86 = vector.extract_strided_slice %65 {offsets = [0, 64], sizes = [2, 32], strides = [1, 1]} : vector<2x96xf32> to vector<2x32xf32>
    %87 = vector.broadcast %12 : vector<1x32xf32> to vector<2x32xf32>
    %88 = arith.addf %86, %87 : vector<2x32xf32>
    %89 = arith.mulf %74, %88 : vector<2x32xf32>
    %90 = arith.addf %85, %89 : vector<2x32xf32>
    %91 = math.tanh %90 : vector<2x32xf32>
    %92 = arith.subf %64, %91 : vector<2x32xf32>
    %93 = arith.mulf %83, %92 : vector<2x32xf32>
    %94 = arith.addf %91, %93 : vector<2x32xf32>
    %cst_18 = arith.constant dense<0.000000e+00> : vector<2x96xf32>
    %95 = tpu.matmul %94, %11, %cst_18 {dimension_numbers = #tpu.dot_dimension_numbers<[1], [0], [0], [1], [0, 0, 1, 1], [], []>} : vector<2x32xf32>, vector<32x96xf32>, vector<2x96xf32> -> vector<2x96xf32>
    %96 = vector.extract_strided_slice %8 {offsets = [0, 3, 0], sizes = [2, 1, 32], strides = [1, 1, 1]} : vector<2x8x32xf32> to vector<2x1x32xf32>
    %97 = vector.shape_cast %96 : vector<2x1x32xf32> to vector<2x32xf32>
    %98 = vector.extract_strided_slice %95 {offsets = [0, 0], sizes = [2, 32], strides = [1, 1]} : vector<2x96xf32> to vector<2x32xf32>
    %99 = arith.addf %97, %98 : vector<2x32xf32>
    %100 = arith.negf %99 : vector<2x32xf32>
    %101 = math.exp %100 : vector<2x32xf32>
    %cst_19 = arith.constant 1.000000e+00 : f32
    %102 = vector.broadcast %cst_19 : f32 to vector<2x32xf32>
    %103 = arith.addf %102, %101 : vector<2x32xf32>
    %104 = arith.divf %102, %103 : vector<2x32xf32>
    %105 = vector.extract_strided_slice %9 {offsets = [0, 3, 0], sizes = [2, 1, 32], strides = [1, 1, 1]} : vector<2x8x32xf32> to vector<2x1x32xf32>
    %106 = vector.shape_cast %105 : vector<2x1x32xf32> to vector<2x32xf32>
    %107 = vector.extract_strided_slice %95 {offsets = [0, 32], sizes = [2, 32], strides = [1, 1]} : vector<2x96xf32> to vector<2x32xf32>
    %108 = arith.addf %106, %107 : vector<2x32xf32>
    %109 = arith.negf %108 : vector<2x32xf32>
    %110 = math.exp %109 : vector<2x32xf32>
    %cst_20 = arith.constant 1.000000e+00 : f32
    %111 = vector.broadcast %cst_20 : f32 to vector<2x32xf32>
    %112 = arith.addf %111, %110 : vector<2x32xf32>
    %113 = arith.divf %111, %112 : vector<2x32xf32>
    %114 = vector.extract_strided_slice %10 {offsets = [0, 3, 0], sizes = [2, 1, 32], strides = [1, 1, 1]} : vector<2x8x32xf32> to vector<2x1x32xf32>
    %115 = vector.shape_cast %114 : vector<2x1x32xf32> to vector<2x32xf32>
    %116 = vector.extract_strided_slice %95 {offsets = [0, 64], sizes = [2, 32], strides = [1, 1]} : vector<2x96xf32> to vector<2x32xf32>
    %117 = vector.broadcast %12 : vector<1x32xf32> to vector<2x32xf32>
    %118 = arith.addf %116, %117 : vector<2x32xf32>
    %119 = arith.mulf %104, %118 : vector<2x32xf32>
    %120 = arith.addf %115, %119 : vector<2x32xf32>
    %121 = math.tanh %120 : vector<2x32xf32>
    %122 = arith.subf %94, %121 : vector<2x32xf32>
    %123 = arith.mulf %113, %122 : vector<2x32xf32>
    %124 = arith.addf %121, %123 : vector<2x32xf32>
    %cst_21 = arith.constant dense<0.000000e+00> : vector<2x96xf32>
    %125 = tpu.matmul %124, %11, %cst_21 {dimension_numbers = #tpu.dot_dimension_numbers<[1], [0], [0], [1], [0, 0, 1, 1], [], []>} : vector<2x32xf32>, vector<32x96xf32>, vector<2x96xf32> -> vector<2x96xf32>
    %126 = vector.extract_strided_slice %8 {offsets = [0, 4, 0], sizes = [2, 1, 32], strides = [1, 1, 1]} : vector<2x8x32xf32> to vector<2x1x32xf32>
    %127 = vector.shape_cast %126 : vector<2x1x32xf32> to vector<2x32xf32>
    %128 = vector.extract_strided_slice %125 {offsets = [0, 0], sizes = [2, 32], strides = [1, 1]} : vector<2x96xf32> to vector<2x32xf32>
    %129 = arith.addf %127, %128 : vector<2x32xf32>
    %130 = arith.negf %129 : vector<2x32xf32>
    %131 = math.exp %130 : vector<2x32xf32>
    %cst_22 = arith.constant 1.000000e+00 : f32
    %132 = vector.broadcast %cst_22 : f32 to vector<2x32xf32>
    %133 = arith.addf %132, %131 : vector<2x32xf32>
    %134 = arith.divf %132, %133 : vector<2x32xf32>
    %135 = vector.extract_strided_slice %9 {offsets = [0, 4, 0], sizes = [2, 1, 32], strides = [1, 1, 1]} : vector<2x8x32xf32> to vector<2x1x32xf32>
    %136 = vector.shape_cast %135 : vector<2x1x32xf32> to vector<2x32xf32>
    %137 = vector.extract_strided_slice %125 {offsets = [0, 32], sizes = [2, 32], strides = [1, 1]} : vector<2x96xf32> to vector<2x32xf32>
    %138 = arith.addf %136, %137 : vector<2x32xf32>
    %139 = arith.negf %138 : vector<2x32xf32>
    %140 = math.exp %139 : vector<2x32xf32>
    %cst_23 = arith.constant 1.000000e+00 : f32
    %141 = vector.broadcast %cst_23 : f32 to vector<2x32xf32>
    %142 = arith.addf %141, %140 : vector<2x32xf32>
    %143 = arith.divf %141, %142 : vector<2x32xf32>
    %144 = vector.extract_strided_slice %10 {offsets = [0, 4, 0], sizes = [2, 1, 32], strides = [1, 1, 1]} : vector<2x8x32xf32> to vector<2x1x32xf32>
    %145 = vector.shape_cast %144 : vector<2x1x32xf32> to vector<2x32xf32>
    %146 = vector.extract_strided_slice %125 {offsets = [0, 64], sizes = [2, 32], strides = [1, 1]} : vector<2x96xf32> to vector<2x32xf32>
    %147 = vector.broadcast %12 : vector<1x32xf32> to vector<2x32xf32>
    %148 = arith.addf %146, %147 : vector<2x32xf32>
    %149 = arith.mulf %134, %148 : vector<2x32xf32>
    %150 = arith.addf %145, %149 : vector<2x32xf32>
    %151 = math.tanh %150 : vector<2x32xf32>
    %152 = arith.subf %124, %151 : vector<2x32xf32>
    %153 = arith.mulf %143, %152 : vector<2x32xf32>
    %154 = arith.addf %151, %153 : vector<2x32xf32>
    %cst_24 = arith.constant dense<0.000000e+00> : vector<2x96xf32>
    %155 = tpu.matmul %154, %11, %cst_24 {dimension_numbers = #tpu.dot_dimension_numbers<[1], [0], [0], [1], [0, 0, 1, 1], [], []>} : vector<2x32xf32>, vector<32x96xf32>, vector<2x96xf32> -> vector<2x96xf32>
    %156 = vector.extract_strided_slice %8 {offsets = [0, 5, 0], sizes = [2, 1, 32], strides = [1, 1, 1]} : vector<2x8x32xf32> to vector<2x1x32xf32>
    %157 = vector.shape_cast %156 : vector<2x1x32xf32> to vector<2x32xf32>
    %158 = vector.extract_strided_slice %155 {offsets = [0, 0], sizes = [2, 32], strides = [1, 1]} : vector<2x96xf32> to vector<2x32xf32>
    %159 = arith.addf %157, %158 : vector<2x32xf32>
    %160 = arith.negf %159 : vector<2x32xf32>
    %161 = math.exp %160 : vector<2x32xf32>
    %cst_25 = arith.constant 1.000000e+00 : f32
    %162 = vector.broadcast %cst_25 : f32 to vector<2x32xf32>
    %163 = arith.addf %162, %161 : vector<2x32xf32>
    %164 = arith.divf %162, %163 : vector<2x32xf32>
    %165 = vector.extract_strided_slice %9 {offsets = [0, 5, 0], sizes = [2, 1, 32], strides = [1, 1, 1]} : vector<2x8x32xf32> to vector<2x1x32xf32>
    %166 = vector.shape_cast %165 : vector<2x1x32xf32> to vector<2x32xf32>
    %167 = vector.extract_strided_slice %155 {offsets = [0, 32], sizes = [2, 32], strides = [1, 1]} : vector<2x96xf32> to vector<2x32xf32>
    %168 = arith.addf %166, %167 : vector<2x32xf32>
    %169 = arith.negf %168 : vector<2x32xf32>
    %170 = math.exp %169 : vector<2x32xf32>
    %cst_26 = arith.constant 1.000000e+00 : f32
    %171 = vector.broadcast %cst_26 : f32 to vector<2x32xf32>
    %172 = arith.addf %171, %170 : vector<2x32xf32>
    %173 = arith.divf %171, %172 : vector<2x32xf32>
    %174 = vector.extract_strided_slice %10 {offsets = [0, 5, 0], sizes = [2, 1, 32], strides = [1, 1, 1]} : vector<2x8x32xf32> to vector<2x1x32xf32>
    %175 = vector.shape_cast %174 : vector<2x1x32xf32> to vector<2x32xf32>
    %176 = vector.extract_strided_slice %155 {offsets = [0, 64], sizes = [2, 32], strides = [1, 1]} : vector<2x96xf32> to vector<2x32xf32>
    %177 = vector.broadcast %12 : vector<1x32xf32> to vector<2x32xf32>
    %178 = arith.addf %176, %177 : vector<2x32xf32>
    %179 = arith.mulf %164, %178 : vector<2x32xf32>
    %180 = arith.addf %175, %179 : vector<2x32xf32>
    %181 = math.tanh %180 : vector<2x32xf32>
    %182 = arith.subf %154, %181 : vector<2x32xf32>
    %183 = arith.mulf %173, %182 : vector<2x32xf32>
    %184 = arith.addf %181, %183 : vector<2x32xf32>
    %cst_27 = arith.constant dense<0.000000e+00> : vector<2x96xf32>
    %185 = tpu.matmul %184, %11, %cst_27 {dimension_numbers = #tpu.dot_dimension_numbers<[1], [0], [0], [1], [0, 0, 1, 1], [], []>} : vector<2x32xf32>, vector<32x96xf32>, vector<2x96xf32> -> vector<2x96xf32>
    %186 = vector.extract_strided_slice %8 {offsets = [0, 6, 0], sizes = [2, 1, 32], strides = [1, 1, 1]} : vector<2x8x32xf32> to vector<2x1x32xf32>
    %187 = vector.shape_cast %186 : vector<2x1x32xf32> to vector<2x32xf32>
    %188 = vector.extract_strided_slice %185 {offsets = [0, 0], sizes = [2, 32], strides = [1, 1]} : vector<2x96xf32> to vector<2x32xf32>
    %189 = arith.addf %187, %188 : vector<2x32xf32>
    %190 = arith.negf %189 : vector<2x32xf32>
    %191 = math.exp %190 : vector<2x32xf32>
    %cst_28 = arith.constant 1.000000e+00 : f32
    %192 = vector.broadcast %cst_28 : f32 to vector<2x32xf32>
    %193 = arith.addf %192, %191 : vector<2x32xf32>
    %194 = arith.divf %192, %193 : vector<2x32xf32>
    %195 = vector.extract_strided_slice %9 {offsets = [0, 6, 0], sizes = [2, 1, 32], strides = [1, 1, 1]} : vector<2x8x32xf32> to vector<2x1x32xf32>
    %196 = vector.shape_cast %195 : vector<2x1x32xf32> to vector<2x32xf32>
    %197 = vector.extract_strided_slice %185 {offsets = [0, 32], sizes = [2, 32], strides = [1, 1]} : vector<2x96xf32> to vector<2x32xf32>
    %198 = arith.addf %196, %197 : vector<2x32xf32>
    %199 = arith.negf %198 : vector<2x32xf32>
    %200 = math.exp %199 : vector<2x32xf32>
    %cst_29 = arith.constant 1.000000e+00 : f32
    %201 = vector.broadcast %cst_29 : f32 to vector<2x32xf32>
    %202 = arith.addf %201, %200 : vector<2x32xf32>
    %203 = arith.divf %201, %202 : vector<2x32xf32>
    %204 = vector.extract_strided_slice %10 {offsets = [0, 6, 0], sizes = [2, 1, 32], strides = [1, 1, 1]} : vector<2x8x32xf32> to vector<2x1x32xf32>
    %205 = vector.shape_cast %204 : vector<2x1x32xf32> to vector<2x32xf32>
    %206 = vector.extract_strided_slice %185 {offsets = [0, 64], sizes = [2, 32], strides = [1, 1]} : vector<2x96xf32> to vector<2x32xf32>
    %207 = vector.broadcast %12 : vector<1x32xf32> to vector<2x32xf32>
    %208 = arith.addf %206, %207 : vector<2x32xf32>
    %209 = arith.mulf %194, %208 : vector<2x32xf32>
    %210 = arith.addf %205, %209 : vector<2x32xf32>
    %211 = math.tanh %210 : vector<2x32xf32>
    %212 = arith.subf %184, %211 : vector<2x32xf32>
    %213 = arith.mulf %203, %212 : vector<2x32xf32>
    %214 = arith.addf %211, %213 : vector<2x32xf32>
    %cst_30 = arith.constant dense<0.000000e+00> : vector<2x96xf32>
    %215 = tpu.matmul %214, %11, %cst_30 {dimension_numbers = #tpu.dot_dimension_numbers<[1], [0], [0], [1], [0, 0, 1, 1], [], []>} : vector<2x32xf32>, vector<32x96xf32>, vector<2x96xf32> -> vector<2x96xf32>
    %216 = vector.extract_strided_slice %8 {offsets = [0, 7, 0], sizes = [2, 1, 32], strides = [1, 1, 1]} : vector<2x8x32xf32> to vector<2x1x32xf32>
    %217 = vector.shape_cast %216 : vector<2x1x32xf32> to vector<2x32xf32>
    %218 = vector.extract_strided_slice %215 {offsets = [0, 0], sizes = [2, 32], strides = [1, 1]} : vector<2x96xf32> to vector<2x32xf32>
    %219 = arith.addf %217, %218 : vector<2x32xf32>
    %220 = arith.negf %219 : vector<2x32xf32>
    %221 = math.exp %220 : vector<2x32xf32>
    %cst_31 = arith.constant 1.000000e+00 : f32
    %222 = vector.broadcast %cst_31 : f32 to vector<2x32xf32>
    %223 = arith.addf %222, %221 : vector<2x32xf32>
    %224 = arith.divf %222, %223 : vector<2x32xf32>
    %225 = vector.extract_strided_slice %9 {offsets = [0, 7, 0], sizes = [2, 1, 32], strides = [1, 1, 1]} : vector<2x8x32xf32> to vector<2x1x32xf32>
    %226 = vector.shape_cast %225 : vector<2x1x32xf32> to vector<2x32xf32>
    %227 = vector.extract_strided_slice %215 {offsets = [0, 32], sizes = [2, 32], strides = [1, 1]} : vector<2x96xf32> to vector<2x32xf32>
    %228 = arith.addf %226, %227 : vector<2x32xf32>
    %229 = arith.negf %228 : vector<2x32xf32>
    %230 = math.exp %229 : vector<2x32xf32>
    %cst_32 = arith.constant 1.000000e+00 : f32
    %231 = vector.broadcast %cst_32 : f32 to vector<2x32xf32>
    %232 = arith.addf %231, %230 : vector<2x32xf32>
    %233 = arith.divf %231, %232 : vector<2x32xf32>
    %234 = vector.extract_strided_slice %10 {offsets = [0, 7, 0], sizes = [2, 1, 32], strides = [1, 1, 1]} : vector<2x8x32xf32> to vector<2x1x32xf32>
    %235 = vector.shape_cast %234 : vector<2x1x32xf32> to vector<2x32xf32>
    %236 = vector.extract_strided_slice %215 {offsets = [0, 64], sizes = [2, 32], strides = [1, 1]} : vector<2x96xf32> to vector<2x32xf32>
    %237 = vector.broadcast %12 : vector<1x32xf32> to vector<2x32xf32>
    %238 = arith.addf %236, %237 : vector<2x32xf32>
    %239 = arith.mulf %224, %238 : vector<2x32xf32>
    %240 = arith.addf %235, %239 : vector<2x32xf32>
    %241 = math.tanh %240 : vector<2x32xf32>
    %242 = arith.subf %214, %241 : vector<2x32xf32>
    %243 = arith.mulf %233, %242 : vector<2x32xf32>
    %244 = arith.addf %241, %243 : vector<2x32xf32>
    %245 = vector.shape_cast %34 : vector<2x32xf32> to vector<2x1x32xf32>
    %246 = vector.shape_cast %64 : vector<2x32xf32> to vector<2x1x32xf32>
    %247 = vector.shape_cast %94 : vector<2x32xf32> to vector<2x1x32xf32>
    %248 = vector.shape_cast %124 : vector<2x32xf32> to vector<2x1x32xf32>
    %249 = vector.shape_cast %154 : vector<2x32xf32> to vector<2x1x32xf32>
    %250 = vector.shape_cast %184 : vector<2x32xf32> to vector<2x1x32xf32>
    %251 = vector.shape_cast %214 : vector<2x32xf32> to vector<2x1x32xf32>
    %252 = vector.shape_cast %244 : vector<2x32xf32> to vector<2x1x32xf32>
    %253 = tpu.concatenate %245, %246, %247, %248, %249, %250, %251, %252 in 1 : vector<2x1x32xf32>, vector<2x1x32xf32>, vector<2x1x32xf32>, vector<2x1x32xf32>, vector<2x1x32xf32>, vector<2x1x32xf32>, vector<2x1x32xf32>, vector<2x1x32xf32> -> vector<2x8x32xf32>
    %c0_33 = arith.constant 0 : index
    %c0_34 = arith.constant 0 : index
    %c0_35 = arith.constant 0 : index
    %254 = vector.load %arg5[%c0_33, %c0_34, %c0_35] : memref<2x8x32xf32, #tpu.memory_space<vmem>>, vector<2x8x32xf32>
    tpu.vector_store %arg5[%c0_33, %c0_34, %c0_35], %253 {strides = array<i32>} : memref<2x8x32xf32, #tpu.memory_space<vmem>>, vector<2x8x32xf32>,
    return
  }
}

</mosaic_0001>

<llo_original>
// kernel: tpu_custom_call.1
$region0: #{tpu_custom_call.1}
  #allocation0 [shape = 'u32[]', space=smem, size = 0x4, offset = 0x4, fixed_abs, tag = 'smem constant byte address 0x4 - core index']
  #allocation1 [shape = 'u32[144,128]{1,0:T(1,128)}', space=vmem, size = 0x12000, scoped, tag = 'internal scratch']
  %s0 = inlined_call_operand.vmem [shape: f32[2,8,4], index: 0, kind: input, shape index: {}]
  %s1 = inlined_call_operand.vmem [shape: f32[4,96], index: 1, kind: input, shape index: {}]
  %s2 = inlined_call_operand.hbm [shape: f32[32,96], index: 2, kind: input, shape index: {}]
  %s3 = inlined_call_operand.vmem [shape: f32[1,96], index: 3, kind: input, shape index: {}]
  %s4 = inlined_call_operand.vmem [shape: f32[1,32], index: 4, kind: input, shape index: {}]
  %s5 = inlined_call_operand.hbm [shape: f32[2,8,32], index: 5, kind: output, shape index: {}]
  %s6 = sld [smem:[#allocation0]]
  $region34: #{tpu_custom_call.1} parent=0
    _
  %s8 = ssub.s32 1, %s6
  %s9 = scalar_select 0, %s8, %s6
  $region1: #{tpu_custom_call.1} parent=0
    #allocation2 [shape = 'u8[16384]{0}', space=vmem, size = 0x4000, scoped, tag = 'input window, operand 2, single buffered']
    #allocation3 [shape = 's32[1]{0}', space=sflag, size = 0x4, scoped, tag = 'scoped memory for tpu_custom_call.1']
    #allocation4 [shape = 's32[1]{0}', space=sflag, size = 0x4, scoped, tag = 'scoped memory for tpu_custom_call.1']
    #allocation5 [shape = 'u8[8192]{0}', space=vmem, size = 0x2000, scoped, tag = 'output window, operand 0, single buffered']
    %10 = vsyncpa [#allocation3], 0
    %11 = vsyncpa [#allocation4], 0
    // Predicated region
    $region2: #{tpu_custom_call.1} parent=1 // pred_check
      _
    $region3: #{tpu_custom_call.1} parent=1 // pred_check_branch
      %13 = sbr.rel (0) target = $region5
    $region4: #{tpu_custom_call.1} parent=1 // pred_region
      _
    $region5: #{tpu_custom_call.1} parent=1 // pred_fallthru
      _
    // Predicated region
    $region6: #{tpu_custom_call.1} parent=1 // pred_check
      _
    $region7: #{tpu_custom_call.1} parent=1 // pred_check_branch
      %15 = sbr.rel (0) target = $region9
    $region8: #{tpu_custom_call.1} parent=1 // pred_region
      _
    $region9: #{tpu_custom_call.1} parent=1 // pred_fallthru
      _
    // Predicated region
    $region10: #{tpu_custom_call.1} parent=1 // pred_check
      _
    $region11: #{tpu_custom_call.1} parent=1 // pred_check_branch
      %17 = sbr.rel (0) target = $region13
    $region12: #{tpu_custom_call.1} parent=1 // pred_region
      %s19 = ssub.s32 512, 512
      %20 = vsyncadd [#allocation3], %s19
      %s21 = sshll.u32 [#allocation2], 4
      %s22 = int_to_ptr.vmem [resolvable:$true] %s21
      %27 = dma.hbm_to_vmem [thread:$0]  %s2, 512, %s22, [#allocation3], 128, 128, 8
    $region13: #{tpu_custom_call.1} parent=1 // pred_fallthru
      _
    // Predicated region
    $region14: #{tpu_custom_call.1} parent=1 // pred_check
      _
    $region15: #{tpu_custom_call.1} parent=1 // pred_check_branch
      %29 = sbr.rel (0) target = $region17
    $region16: #{tpu_custom_call.1} parent=1 // pred_region
      _
    $region17: #{tpu_custom_call.1} parent=1 // pred_fallthru
      _
    // Predicated region
    $region18: #{tpu_custom_call.1} parent=1 // pred_check
      _
    $region19: #{tpu_custom_call.1} parent=1 // pred_check_branch
      %31 = sbr.rel (0) target = $region21
    $region20: #{tpu_custom_call.1} parent=1 // pred_region
      _
    $region21: #{tpu_custom_call.1} parent=1 // pred_fallthru
      _
    // Predicated region
    $region22: #{tpu_custom_call.1} parent=1 // pred_check
      _
    $region23: #{tpu_custom_call.1} parent=1 // pred_check_branch
      %33 = sbr.rel (0) target = $region25
    $region24: #{tpu_custom_call.1} parent=1 // pred_region
      %34 = dma.done [#allocation3], 512
    $region25: #{tpu_custom_call.1} parent=1 // pred_fallthru
      _
    %v35 = vld [vmem:[%s0] sm:$0xff]
    %v36 = vld [vmem:[%s0 + $0x8] sm:$0xff]
    %v37 = vld [vmem:[%s1] sm:$0xf]
    %v38 = vld [vmem:[%s3] sm:$0x1]
    %v40 = vlaneseq
    %v41 = vshrl.u32 %v40, 7
    %v42 = vsub.s32 0, %v41
    %v43 = vrot.slane %v38, %v42
    %vm45 = vcmask 31744
    %v47 = vsel %vm45, %v35, 0
    %v50 = vsel %vm45, %v36, 0
    %vm52 = vcmask 1043456
    %v54 = vsel %vm52, %v37, 0
    %56 = vmatprep.subr.mxu0 0.0
    %57 = vmatpush1.msra.mxu0 %v54
    %58 = vmatprep.subr.mxu0 0.0
    %59 = vmatpush1.msra.mxu0 0.0
    %60 = vmatprep.subr.mxu0 0.0
    %61 = vmatpush1.msra.mxu0 0.0
    %62 = vmatprep.subr.mxu0 0.0
    %63 = vmatpush1.msra.mxu0 0.0
    %64 = vmatprep.subr.mxu0 0.0
    %65 = vmatpush1.msra.mxu0 0.0
    %66 = vmatprep.subr.mxu0 0.0
    %67 = vmatpush1.msra.mxu0 0.0
    %68 = vmatprep.subr.mxu0 0.0
    %69 = vmatpush1.msra.mxu0 0.0
    %70 = vmatprep.subr.mxu0 0.0
    %71 = vmatpush1.msra.mxu0 0.0
    %72 = vmatprep.subr.mxu0 0.0
    %73 = vmatpush1.msra.mxu0 0.0
    %74 = vmatprep.subr.mxu0 0.0
    %75 = vmatpush1.msra.mxu0 0.0
    %76 = vmatprep.subr.mxu0 0.0
    %77 = vmatpush1.msra.mxu0 0.0
    %78 = vmatprep.subr.mxu0 0.0
    %79 = vmatpush1.msra.mxu0 0.0
    %80 = vmatprep.subr.mxu0 0.0
    %81 = vmatpush1.msra.mxu0 0.0
    %82 = vmatprep.subr.mxu0 0.0
    %83 = vmatpush1.msra.mxu0 0.0
    %84 = vmatprep.subr.mxu0 0.0
    %85 = vmatpush1.msra.mxu0 0.0
    %86 = vmatprep.subr.mxu0 0.0
    %87 = vmatpush1.msra.mxu0 0.0
    %88 = vmatprep.subr.mxu0 0.0
    %89 = vmatpush1.msra.mxu0 0.0
    %90 = vmatprep.subr.mxu0 0.0
    %91 = vmatpush1.msra.mxu0 0.0
    %92 = vmatprep.subr.mxu0 0.0
    %93 = vmatpush1.msra.mxu0 0.0
    %94 = vmatprep.subr.mxu0 0.0
    %95 = vmatpush1.msra.mxu0 0.0
    %96 = vmatprep.subr.mxu0 0.0
    %97 = vmatpush1.msra.mxu0 0.0
    %98 = vmatprep.subr.mxu0 0.0
    %99 = vmatpush1.msra.mxu0 0.0
    %100 = vmatprep.subr.mxu0 0.0
    %101 = vmatpush1.msra.mxu0 0.0
    %102 = vmatprep.subr.mxu0 0.0
    %103 = vmatpush1.msra.mxu0 0.0
    %104 = vmatprep.subr.mxu0 0.0
    %105 = vmatpush1.msra.mxu0 0.0
    %106 = vmatprep.subr.mxu0 0.0
    %107 = vmatpush1.msra.mxu0 0.0
    %108 = vmatprep.subr.mxu0 0.0
    %109 = vmatpush1.msra.mxu0 0.0
    %110 = vmatprep.subr.mxu0 0.0
    %111 = vmatpush1.msra.mxu0 0.0
    %112 = vmatprep.subr.mxu0 0.0
    %113 = vmatpush1.msra.mxu0 0.0
    %114 = vmatprep.subr.mxu0 0.0
    %115 = vmatpush1.msra.mxu0 0.0
    %116 = vmatprep.subr.mxu0 0.0
    %117 = vmatpush1.msra.mxu0 0.0
    %118 = vmatprep.subr.mxu0 0.0
    %119 = vmatpush1.msra.mxu0 0.0
    %120 = vmatprep.mubr.f32.mxu0 0.0
    %121 = vmatmul.mubr.f32.gmra.mrb[0].mxu0 %v47
    %v122 = vpop.f32.mrb[0].mxu0
    %v123 = vadd.f32 %v43, %v122
    %v124 = vpop.f32.mrb[0].mxu0
    %125 = vmatprep.mubr.f32.mxu0 0.0
    %126 = vmatmul.mubr.f32.gmra.mrb[0].mxu0 %v50
    %v127 = vpop.f32.mrb[0].mxu0
    %v128 = vadd.f32 %v43, %v127
    %v129 = vpop.f32.mrb[0].mxu0
    %130 = vdwg.mxu0
    %v131 = vld [vmem:[#allocation2] sm:$0xff]
    %v132 = vld [vmem:[#allocation2 + $0x8] sm:$0xff]
    %v133 = vld [vmem:[#allocation2 + $0x10] sm:$0xff]
    %v134 = vld [vmem:[#allocation2 + $0x18] sm:$0xff]
    %v135 = vld [vmem:[%s4] sm:$0x1]
    %v136 = vxor.u32 %v123, 2147483648
    %v137 = vxor.u32 %v128, 2147483648
    %v138 = vmul.f32 %v136, 1.442695
    %v139 = vpow.pop %v138
    %v140 = vmul.f32 %v137, 1.442695
    %v141 = vpow.pop %v140
    %v142 = vadd.f32 %v139, 1.0
    %v143 = vadd.f32 %v141, 1.0
    %v144 = vrcp.pop %v142
    %v145 = vmul.f32 1.0, %v144
    %v146 = vrcp.pop %v143
    %v147 = vmul.f32 1.0, %v146
    %v149 = vlaneseq
    %v150 = vshrl.u32 %v149, 7
    %v151 = vsub.s32 0, %v150
    %v152 = vrot.slane %v135, %v151
    %v154 = vmul.f32 %v145, %v152
    %v155 = vmul.f32 %v147, %v152
    %158 = vrot.lane.b32.xlu0 %v154, 64
    %v159 = vpop.permute.xlu0 %158
    %160 = vrot.lane.b32.xlu0 %v155, 64
    %v161 = vpop.permute.xlu0 %160
    %v164 = vadd.f32 %v123, %v159
    %v165 = vadd.f32 %v128, %v161
    %v166 = vtanh.pop %v164
    %v167 = vtanh.pop %v165
    %170 = vrot.lane.b32.xlu0 %v166, 96
    %v171 = vpop.permute.xlu0 %170
    %172 = vrot.lane.b32.xlu0 %v167, 96
    %v173 = vpop.permute.xlu0 %172
    %v176 = vmul.f32 %v145, %v171
    %v177 = vmul.f32 %v147, %v173
    %180 = vrot.lane.b32.xlu0 %v176, 32
    %v181 = vpop.permute.xlu0 %180
    %182 = vrot.lane.b32.xlu0 %v177, 32
    %v183 = vpop.permute.xlu0 %182
    %v186 = vsub.f32 %v166, %v181
    %v187 = vsub.f32 %v167, %v183
    %v190 = vrot.slane %v187, 7
    %vm191 = vcmask 1041409
    %v192 = vsel %vm191, %v190, %v186
    %193 = vrot.lane.b32.xlu0 %v192, 64
    %v194 = vpop.permute.xlu0 %193
    %vm195 = vcmask 261120
    %v196 = vsel %vm195, %v194, 0
    %198 = vmatprep.subr.mxu0 0.0
    %199 = vmatpush1.msra.mxu0 %v131
    %200 = vmatprep.subr.mxu0 0.0
    %201 = vmatpush1.msra.mxu0 %v132
    %202 = vmatprep.subr.mxu0 0.0
    %203 = vmatpush1.msra.mxu0 %v133
    %204 = vmatprep.subr.mxu0 0.0
    %205 = vmatpush1.msra.mxu0 %v134
    %206 = vmatprep.subr.mxu0 0.0
    %207 = vmatpush1.msra.mxu0 0.0
    %208 = vmatprep.subr.mxu0 0.0
    %209 = vmatpush1.msra.mxu0 0.0
    %210 = vmatprep.subr.mxu0 0.0
    %211 = vmatpush1.msra.mxu0 0.0
    %212 = vmatprep.subr.mxu0 0.0
    %213 = vmatpush1.msra.mxu0 0.0
    %214 = vmatprep.subr.mxu0 0.0
    %215 = vmatpush1.msra.mxu0 0.0
    %216 = vmatprep.subr.mxu0 0.0
    %217 = vmatpush1.msra.mxu0 0.0
    %218 = vmatprep.subr.mxu0 0.0
    %219 = vmatpush1.msra.mxu0 0.0
    %220 = vmatprep.subr.mxu0 0.0
    %221 = vmatpush1.msra.mxu0 0.0
    %222 = vmatprep.subr.mxu0 0.0
    %223 = vmatpush1.msra.mxu0 0.0
    %224 = vmatprep.subr.mxu0 0.0
    %225 = vmatpush1.msra.mxu0 0.0
    %226 = vmatprep.subr.mxu0 0.0
    %227 = vmatpush1.msra.mxu0 0.0
    %228 = vmatprep.subr.mxu0 0.0
    %229 = vmatpush1.msra.mxu0 0.0
    %230 = vmatprep.subr.mxu0 0.0
    %231 = vmatpush1.msra.mxu0 0.0
    %232 = vmatprep.subr.mxu0 0.0
    %233 = vmatpush1.msra.mxu0 0.0
    %234 = vmatprep.subr.mxu0 0.0
    %235 = vmatpush1.msra.mxu0 0.0
    %236 = vmatprep.subr.mxu0 0.0
    %237 = vmatpush1.msra.mxu0 0.0
    %238 = vmatprep.subr.mxu0 0.0
    %239 = vmatpush1.msra.mxu0 0.0
    %240 = vmatprep.subr.mxu0 0.0
    %241 = vmatpush1.msra.mxu0 0.0
    %242 = vmatprep.subr.mxu0 0.0
    %243 = vmatpush1.msra.mxu0 0.0
    %244 = vmatprep.subr.mxu0 0.0
    %245 = vmatpush1.msra.mxu0 0.0
    %246 = vmatprep.subr.mxu0 0.0
    %247 = vmatpush1.msra.mxu0 0.0
    %248 = vmatprep.subr.mxu0 0.0
    %249 = vmatpush1.msra.mxu0 0.0
    %250 = vmatprep.subr.mxu0 0.0
    %251 = vmatpush1.msra.mxu0 0.0
    %252 = vmatprep.subr.mxu0 0.0
    %253 = vmatpush1.msra.mxu0 0.0
    %254 = vmatprep.subr.mxu0 0.0
    %255 = vmatpush1.msra.mxu0 0.0
    %256 = vmatprep.subr.mxu0 0.0
    %257 = vmatpush1.msra.mxu0 0.0
    %258 = vmatprep.subr.mxu0 0.0
    %259 = vmatpush1.msra.mxu0 0.0
    %260 = vmatprep.subr.mxu0 0.0
    %261 = vmatpush1.msra.mxu0 0.0
    %262 = vmatprep.mubr.f32.mxu0 0.0
    %263 = vmatmul.mubr.f32.gmra.mrb[0].mxu0 %v196
    %v264 = vpop.f32.mrb[0].mxu0
    %v265 = vadd.f32 0.0, %v264
    %v266 = vpop.f32.mrb[0].mxu0
    %267 = vdwg.mxu0
    %v269 = vrot.slane %v265, 7
    %v272 = vadd.f32 %v123, %v269
    %v273 = vadd.f32 %v128, %v265
    %v274 = vxor.u32 %v272, 2147483648
    %v275 = vxor.u32 %v273, 2147483648
    %v276 = vmul.f32 %v274, 1.442695
    %v277 = vpow.pop %v276
    %v278 = vmul.f32 %v275, 1.442695
    %v279 = vpow.pop %v278
    %v280 = vadd.f32 %v277, 1.0
    %v281 = vadd.f32 %v279, 1.0
    %v282 = vrcp.pop %v280
    %v283 = vmul.f32 1.0, %v282
    %v284 = vrcp.pop %v281
    %v285 = vmul.f32 1.0, %v284
    %286 = vrot.lane.b32.xlu0 %v152, 64
    %v287 = vpop.permute.xlu0 %286
    %v289 = vadd.f32 %v265, %v287
    %v291 = vrot.slane %v289, 7
    %292 = vrot.lane.b32.xlu0 %v291, 64
    %v293 = vpop.permute.xlu0 %292
    %294 = vrot.lane.b32.xlu0 %v289, 64
    %v295 = vpop.permute.xlu0 %294
    %v298 = vmul.f32 %v283, %v293
    %v299 = vmul.f32 %v285, %v295
    %302 = vrot.lane.b32.xlu0 %v298, 64
    %v303 = vpop.permute.xlu0 %302
    %304 = vrot.lane.b32.xlu0 %v299, 64
    %v305 = vpop.permute.xlu0 %304
    %v308 = vadd.f32 %v123, %v303
    %v309 = vadd.f32 %v128, %v305
    %v310 = vtanh.pop %v308
    %v311 = vtanh.pop %v309
    %v314 = vrot.slane %v310, 1
    %v315 = vrot.slane %v311, 1
    %v318 = vsub.f32 %v186, %v314
    %v319 = vsub.f32 %v187, %v315
    %v322 = vrot.slane %v318, 7
    %v323 = vrot.slane %v319, 7
    %324 = vrot.lane.b32.xlu0 %v322, 96
    %v325 = vpop.permute.xlu0 %324
    %326 = vrot.lane.b32.xlu0 %v323, 96
    %v327 = vpop.permute.xlu0 %326
    %v330 = vmul.f32 %v283, %v325
    %v331 = vmul.f32 %v285, %v327
    %334 = vrot.lane.b32.xlu0 %v330, 32
    %v335 = vpop.permute.xlu0 %334
    %336 = vrot.lane.b32.xlu0 %v331, 32
    %v337 = vpop.permute.xlu0 %336
    %v340 = vadd.f32 %v310, %v335
    %v341 = vadd.f32 %v311, %v337
    %v344 = vrot.slane %v340, 1
    %v345 = vsel %vm191, %v341, %v344
    %346 = vrot.lane.b32.xlu0 %v345, 64
    %v347 = vpop.permute.xlu0 %346
    %v348 = vsel %vm195, %v347, 0
    %350 = vmatprep.subr.mxu0 0.0
    %351 = vmatpush1.msra.mxu0 %v131
    %352 = vmatprep.subr.mxu0 0.0
    %353 = vmatpush1.msra.mxu0 %v132
    %354 = vmatprep.subr.mxu0 0.0
    %355 = vmatpush1.msra.mxu0 %v133
    %356 = vmatprep.subr.mxu0 0.0
    %357 = vmatpush1.msra.mxu0 %v134
    %358 = vmatprep.subr.mxu0 0.0
    %359 = vmatpush1.msra.mxu0 0.0
    %360 = vmatprep.subr.mxu0 0.0
    %361 = vmatpush1.msra.mxu0 0.0
    %362 = vmatprep.subr.mxu0 0.0
    %363 = vmatpush1.msra.mxu0 0.0
    %364 = vmatprep.subr.mxu0 0.0
    %365 = vmatpush1.msra.mxu0 0.0
    %366 = vmatprep.subr.mxu0 0.0
    %367 = vmatpush1.msra.mxu0 0.0
    %368 = vmatprep.subr.mxu0 0.0
    %369 = vmatpush1.msra.mxu0 0.0
    %370 = vmatprep.subr.mxu0 0.0
    %371 = vmatpush1.msra.mxu0 0.0
    %372 = vmatprep.subr.mxu0 0.0
    %373 = vmatpush1.msra.mxu0 0.0
    %374 = vmatprep.subr.mxu0 0.0
    %375 = vmatpush1.msra.mxu0 0.0
    %376 = vmatprep.subr.mxu0 0.0
    %377 = vmatpush1.msra.mxu0 0.0
    %378 = vmatprep.subr.mxu0 0.0
    %379 = vmatpush1.msra.mxu0 0.0
    %380 = vmatprep.subr.mxu0 0.0
    %381 = vmatpush1.msra.mxu0 0.0
    %382 = vmatprep.subr.mxu0 0.0
    %383 = vmatpush1.msra.mxu0 0.0
    %384 = vmatprep.subr.mxu0 0.0
    %385 = vmatpush1.msra.mxu0 0.0
    %386 = vmatprep.subr.mxu0 0.0
    %387 = vmatpush1.msra.mxu0 0.0
    %388 = vmatprep.subr.mxu0 0.0
    %389 = vmatpush1.msra.mxu0 0.0
    %390 = vmatprep.subr.mxu0 0.0
    %391 = vmatpush1.msra.mxu0 0.0
    %392 = vmatprep.subr.mxu0 0.0
    %393 = vmatpush1.msra.mxu0 0.0
    %394 = vmatprep.subr.mxu0 0.0
    %395 = vmatpush1.msra.mxu0 0.0
    %396 = vmatprep.subr.mxu0 0.0
    %397 = vmatpush1.msra.mxu0 0.0
    %398 = vmatprep.subr.mxu0 0.0
    %399 = vmatpush1.msra.mxu0 0.0
    %400 = vmatprep.subr.mxu0 0.0
    %401 = vmatpush1.msra.mxu0 0.0
    %402 = vmatprep.subr.mxu0 0.0
    %403 = vmatpush1.msra.mxu0 0.0
    %404 = vmatprep.subr.mxu0 0.0
    %405 = vmatpush1.msra.mxu0 0.0
    %406 = vmatprep.subr.mxu0 0.0
    %407 = vmatpush1.msra.mxu0 0.0
    %408 = vmatprep.subr.mxu0 0.0
    %409 = vmatpush1.msra.mxu0 0.0
    %410 = vmatprep.subr.mxu0 0.0
    %411 = vmatpush1.msra.mxu0 0.0
    %412 = vmatprep.subr.mxu0 0.0
    %413 = vmatpush1.msra.mxu0 0.0
    %414 = vmatprep.mubr.f32.mxu0 0.0
    %415 = vmatmul.mubr.f32.gmra.mrb[0].mxu0 %v348
    %v416 = vpop.f32.mrb[0].mxu0
    %v417 = vadd.f32 0.0, %v416
    %v418 = vpop.f32.mrb[0].mxu0
    %419 = vdwg.mxu0
    %v421 = vrot.slane %v417, 6
    %v422 = vrot.slane %v417, 7
    %v425 = vadd.f32 %v123, %v421
    %v426 = vadd.f32 %v128, %v422
    %v427 = vxor.u32 %v425, 2147483648
    %v428 = vxor.u32 %v426, 2147483648
    %v429 = vmul.f32 %v427, 1.442695
    %v430 = vpow.pop %v429
    %v431 = vmul.f32 %v428, 1.442695
    %v432 = vpow.pop %v431
    %v433 = vadd.f32 %v430, 1.0
    %v434 = vadd.f32 %v432, 1.0
    %v435 = vrcp.pop %v433
    %v436 = vmul.f32 1.0, %v435
    %v437 = vrcp.pop %v434
    %v438 = vmul.f32 1.0, %v437
    %v439 = vadd.f32 %v417, %v287
    %v441 = vrot.slane %v439, 6
    %v442 = vrot.slane %v439, 7
    %443 = vrot.lane.b32.xlu0 %v441, 64
    %v444 = vpop.permute.xlu0 %443
    %445 = vrot.lane.b32.xlu0 %v442, 64
    %v446 = vpop.permute.xlu0 %445
    %v449 = vmul.f32 %v436, %v444
    %v450 = vmul.f32 %v438, %v446
    %453 = vrot.lane.b32.xlu0 %v449, 64
    %v454 = vpop.permute.xlu0 %453
    %455 = vrot.lane.b32.xlu0 %v450, 64
    %v456 = vpop.permute.xlu0 %455
    %v459 = vadd.f32 %v123, %v454
    %v460 = vadd.f32 %v128, %v456
    %v461 = vtanh.pop %v459
    %v462 = vtanh.pop %v460
    %v465 = vrot.slane %v461, 1
    %v466 = vrot.slane %v462, 1
    %v469 = vsub.f32 %v340, %v465
    %v470 = vsub.f32 %v341, %v466
    %v473 = vrot.slane %v469, 7
    %v474 = vrot.slane %v470, 7
    %475 = vrot.lane.b32.xlu0 %v473, 96
    %v476 = vpop.permute.xlu0 %475
    %477 = vrot.lane.b32.xlu0 %v474, 96
    %v478 = vpop.permute.xlu0 %477
    %v481 = vmul.f32 %v436, %v476
    %v482 = vmul.f32 %v438, %v478
    %485 = vrot.lane.b32.xlu0 %v481, 32
    %v486 = vpop.permute.xlu0 %485
    %487 = vrot.lane.b32.xlu0 %v482, 32
    %v488 = vpop.permute.xlu0 %487
    %v491 = vadd.f32 %v461, %v486
    %v492 = vadd.f32 %v462, %v488
    %v495 = vrot.slane %v491, 2
    %v496 = vrot.slane %v492, 1
    %v497 = vsel %vm191, %v496, %v495
    %498 = vrot.lane.b32.xlu0 %v497, 64
    %v499 = vpop.permute.xlu0 %498
    %v500 = vsel %vm195, %v499, 0
    %502 = vmatprep.subr.mxu0 0.0
    %503 = vmatpush1.msra.mxu0 %v131
    %504 = vmatprep.subr.mxu0 0.0
    %505 = vmatpush1.msra.mxu0 %v132
    %506 = vmatprep.subr.mxu0 0.0
    %507 = vmatpush1.msra.mxu0 %v133
    %508 = vmatprep.subr.mxu0 0.0
    %509 = vmatpush1.msra.mxu0 %v134
    %510 = vmatprep.subr.mxu0 0.0
    %511 = vmatpush1.msra.mxu0 0.0
    %512 = vmatprep.subr.mxu0 0.0
    %513 = vmatpush1.msra.mxu0 0.0
    %514 = vmatprep.subr.mxu0 0.0
    %515 = vmatpush1.msra.mxu0 0.0
    %516 = vmatprep.subr.mxu0 0.0
    %517 = vmatpush1.msra.mxu0 0.0
    %518 = vmatprep.subr.mxu0 0.0
    %519 = vmatpush1.msra.mxu0 0.0
    %520 = vmatprep.subr.mxu0 0.0
    %521 = vmatpush1.msra.mxu0 0.0
    %522 = vmatprep.subr.mxu0 0.0
    %523 = vmatpush1.msra.mxu0 0.0
    %524 = vmatprep.subr.mxu0 0.0
    %525 = vmatpush1.msra.mxu0 0.0
    %526 = vmatprep.subr.mxu0 0.0
    %527 = vmatpush1.msra.mxu0 0.0
    %528 = vmatprep.subr.mxu0 0.0
    %529 = vmatpush1.msra.mxu0 0.0
    %530 = vmatprep.subr.mxu0 0.0
    %531 = vmatpush1.msra.mxu0 0.0
    %532 = vmatprep.subr.mxu0 0.0
    %533 = vmatpush1.msra.mxu0 0.0
    %534 = vmatprep.subr.mxu0 0.0
    %535 = vmatpush1.msra.mxu0 0.0
    %536 = vmatprep.subr.mxu0 0.0
    %537 = vmatpush1.msra.mxu0 0.0
    %538 = vmatprep.subr.mxu0 0.0
    %539 = vmatpush1.msra.mxu0 0.0
    %540 = vmatprep.subr.mxu0 0.0
    %541 = vmatpush1.msra.mxu0 0.0
    %542 = vmatprep.subr.mxu0 0.0
    %543 = vmatpush1.msra.mxu0 0.0
    %544 = vmatprep.subr.mxu0 0.0
    %545 = vmatpush1.msra.mxu0 0.0
    %546 = vmatprep.subr.mxu0 0.0
    %547 = vmatpush1.msra.mxu0 0.0
    %548 = vmatprep.subr.mxu0 0.0
    %549 = vmatpush1.msra.mxu0 0.0
    %550 = vmatprep.subr.mxu0 0.0
    %551 = vmatpush1.msra.mxu0 0.0
    %552 = vmatprep.subr.mxu0 0.0
    %553 = vmatpush1.msra.mxu0 0.0
    %554 = vmatprep.subr.mxu0 0.0
    %555 = vmatpush1.msra.mxu0 0.0
    %556 = vmatprep.subr.mxu0 0.0
    %557 = vmatpush1.msra.mxu0 0.0
    %558 = vmatprep.subr.mxu0 0.0
    %559 = vmatpush1.msra.mxu0 0.0
    %560 = vmatprep.subr.mxu0 0.0
    %561 = vmatpush1.msra.mxu0 0.0
    %562 = vmatprep.subr.mxu0 0.0
    %563 = vmatpush1.msra.mxu0 0.0
    %564 = vmatprep.subr.mxu0 0.0
    %565 = vmatpush1.msra.mxu0 0.0
    %566 = vmatprep.mubr.f32.mxu0 0.0
    %567 = vmatmul.mubr.f32.gmra.mrb[0].mxu0 %v500
    %v568 = vpop.f32.mrb[0].mxu0
    %v569 = vadd.f32 0.0, %v568
    %v570 = vpop.f32.mrb[0].mxu0
    %571 = vdwg.mxu0
    %v573 = vrot.slane %v569, 5
    %v574 = vrot.slane %v569, 6
    %v577 = vadd.f32 %v123, %v573
    %v578 = vadd.f32 %v128, %v574
    %v579 = vxor.u32 %v577, 2147483648
    %v580 = vxor.u32 %v578, 2147483648
    %v581 = vmul.f32 %v579, 1.442695
    %v582 = vpow.pop %v581
    %v583 = vmul.f32 %v580, 1.442695
    %v584 = vpow.pop %v583
    %v585 = vadd.f32 %v582, 1.0
    %v586 = vadd.f32 %v584, 1.0
    %v587 = vrcp.pop %v585
    %v588 = vmul.f32 1.0, %v587
    %v589 = vrcp.pop %v586
    %v590 = vmul.f32 1.0, %v589
    %v591 = vadd.f32 %v569, %v287
    %v593 = vrot.slane %v591, 5
    %v594 = vrot.slane %v591, 6
    %595 = vrot.lane.b32.xlu0 %v593, 64
    %v596 = vpop.permute.xlu0 %595
    %597 = vrot.lane.b32.xlu0 %v594, 64
    %v598 = vpop.permute.xlu0 %597
    %v601 = vmul.f32 %v588, %v596
    %v602 = vmul.f32 %v590, %v598
    %605 = vrot.lane.b32.xlu0 %v601, 64
    %v606 = vpop.permute.xlu0 %605
    %607 = vrot.lane.b32.xlu0 %v602, 64
    %v608 = vpop.permute.xlu0 %607
    %v611 = vadd.f32 %v123, %v606
    %v612 = vadd.f32 %v128, %v608
    %v613 = vtanh.pop %v611
    %v614 = vtanh.pop %v612
    %v617 = vrot.slane %v613, 1
    %v618 = vrot.slane %v614, 1
    %v621 = vsub.f32 %v491, %v617
    %v622 = vsub.f32 %v492, %v618
    %v625 = vrot.slane %v621, 7
    %v626 = vrot.slane %v622, 7
    %627 = vrot.lane.b32.xlu0 %v625, 96
    %v628 = vpop.permute.xlu0 %627
    %629 = vrot.lane.b32.xlu0 %v626, 96
    %v630 = vpop.permute.xlu0 %629
    %v633 = vmul.f32 %v588, %v628
    %v634 = vmul.f32 %v590, %v630
    %637 = vrot.lane.b32.xlu0 %v633, 32
    %v638 = vpop.permute.xlu0 %637
    %639 = vrot.lane.b32.xlu0 %v634, 32
    %v640 = vpop.permute.xlu0 %639
    %v643 = vadd.f32 %v613, %v638
    %v644 = vadd.f32 %v614, %v640
    %v647 = vrot.slane %v643, 3
    %v648 = vrot.slane %v644, 2
    %v649 = vsel %vm191, %v648, %v647
    %650 = vrot.lane.b32.xlu0 %v649, 64
    %v651 = vpop.permute.xlu0 %650
    %v652 = vsel %vm195, %v651, 0
    %654 = vmatprep.subr.mxu0 0.0
    %655 = vmatpush1.msra.mxu0 %v131
    %656 = vmatprep.subr.mxu0 0.0
    %657 = vmatpush1.msra.mxu0 %v132
    %658 = vmatprep.subr.mxu0 0.0
    %659 = vmatpush1.msra.mxu0 %v133
    %660 = vmatprep.subr.mxu0 0.0
    %661 = vmatpush1.msra.mxu0 %v134
    %662 = vmatprep.subr.mxu0 0.0
    %663 = vmatpush1.msra.mxu0 0.0
    %664 = vmatprep.subr.mxu0 0.0
    %665 = vmatpush1.msra.mxu0 0.0
    %666 = vmatprep.subr.mxu0 0.0
    %667 = vmatpush1.msra.mxu0 0.0
    %668 = vmatprep.subr.mxu0 0.0
    %669 = vmatpush1.msra.mxu0 0.0
    %670 = vmatprep.subr.mxu0 0.0
    %671 = vmatpush1.msra.mxu0 0.0
    %672 = vmatprep.subr.mxu0 0.0
    %673 = vmatpush1.msra.mxu0 0.0
    %674 = vmatprep.subr.mxu0 0.0
    %675 = vmatpush1.msra.mxu0 0.0
    %676 = vmatprep.subr.mxu0 0.0
    %677 = vmatpush1.msra.mxu0 0.0
    %678 = vmatprep.subr.mxu0 0.0
    %679 = vmatpush1.msra.mxu0 0.0
    %680 = vmatprep.subr.mxu0 0.0
    %681 = vmatpush1.msra.mxu0 0.0
    %682 = vmatprep.subr.mxu0 0.0
    %683 = vmatpush1.msra.mxu0 0.0
    %684 = vmatprep.subr.mxu0 0.0
    %685 = vmatpush1.msra.mxu0 0.0
    %686 = vmatprep.subr.mxu0 0.0
    %687 = vmatpush1.msra.mxu0 0.0
    %688 = vmatprep.subr.mxu0 0.0
    %689 = vmatpush1.msra.mxu0 0.0
    %690 = vmatprep.subr.mxu0 0.0
    %691 = vmatpush1.msra.mxu0 0.0
    %692 = vmatprep.subr.mxu0 0.0
    %693 = vmatpush1.msra.mxu0 0.0
    %694 = vmatprep.subr.mxu0 0.0
    %695 = vmatpush1.msra.mxu0 0.0
    %696 = vmatprep.subr.mxu0 0.0
    %697 = vmatpush1.msra.mxu0 0.0
    %698 = vmatprep.subr.mxu0 0.0
    %699 = vmatpush1.msra.mxu0 0.0
    %700 = vmatprep.subr.mxu0 0.0
    %701 = vmatpush1.msra.mxu0 0.0
    %702 = vmatprep.subr.mxu0 0.0
    %703 = vmatpush1.msra.mxu0 0.0
    %704 = vmatprep.subr.mxu0 0.0
    %705 = vmatpush1.msra.mxu0 0.0
    %706 = vmatprep.subr.mxu0 0.0
    %707 = vmatpush1.msra.mxu0 0.0
    %708 = vmatprep.subr.mxu0 0.0
    %709 = vmatpush1.msra.mxu0 0.0
    %710 = vmatprep.subr.mxu0 0.0
    %711 = vmatpush1.msra.mxu0 0.0
    %712 = vmatprep.subr.mxu0 0.0
    %713 = vmatpush1.msra.mxu0 0.0
    %714 = vmatprep.subr.mxu0 0.0
    %715 = vmatpush1.msra.mxu0 0.0
    %716 = vmatprep.subr.mxu0 0.0
    %717 = vmatpush1.msra.mxu0 0.0
    %718 = vmatprep.mubr.f32.mxu0 0.0
    %719 = vmatmul.mubr.f32.gmra.mrb[0].mxu0 %v652
    %v720 = vpop.f32.mrb[0].mxu0
    %v721 = vadd.f32 0.0, %v720
    %v722 = vpop.f32.mrb[0].mxu0
    %723 = vdwg.mxu0
    %v725 = vrot.slane %v721, 4
    %v726 = vrot.slane %v721, 5
    %v729 = vadd.f32 %v123, %v725
    %v730 = vadd.f32 %v128, %v726
    %v731 = vxor.u32 %v729, 2147483648
    %v732 = vxor.u32 %v730, 2147483648
    %v733 = vmul.f32 %v731, 1.442695
    %v734 = vpow.pop %v733
    %v735 = vmul.f32 %v732, 1.442695
    %v736 = vpow.pop %v735
    %v737 = vadd.f32 %v734, 1.0
    %v738 = vadd.f32 %v736, 1.0
    %v739 = vrcp.pop %v737
    %v740 = vmul.f32 1.0, %v739
    %v741 = vrcp.pop %v738
    %v742 = vmul.f32 1.0, %v741
    %v743 = vadd.f32 %v721, %v287
    %v745 = vrot.slane %v743, 4
    %v746 = vrot.slane %v743, 5
    %747 = vrot.lane.b32.xlu0 %v745, 64
    %v748 = vpop.permute.xlu0 %747
    %749 = vrot.lane.b32.xlu0 %v746, 64
    %v750 = vpop.permute.xlu0 %749
    %v753 = vmul.f32 %v740, %v748
    %v754 = vmul.f32 %v742, %v750
    %757 = vrot.lane.b32.xlu0 %v753, 64
    %v758 = vpop.permute.xlu0 %757
    %759 = vrot.lane.b32.xlu0 %v754, 64
    %v760 = vpop.permute.xlu0 %759
    %v763 = vadd.f32 %v123, %v758
    %v764 = vadd.f32 %v128, %v760
    %v765 = vtanh.pop %v763
    %v766 = vtanh.pop %v764
    %v769 = vrot.slane %v765, 1
    %v770 = vrot.slane %v766, 1
    %v773 = vsub.f32 %v643, %v769
    %v774 = vsub.f32 %v644, %v770
    %v777 = vrot.slane %v773, 7
    %v778 = vrot.slane %v774, 7
    %779 = vrot.lane.b32.xlu0 %v777, 96
    %v780 = vpop.permute.xlu0 %779
    %781 = vrot.lane.b32.xlu0 %v778, 96
    %v782 = vpop.permute.xlu0 %781
    %v785 = vmul.f32 %v740, %v780
    %v786 = vmul.f32 %v742, %v782
    %789 = vrot.lane.b32.xlu0 %v785, 32
    %v790 = vpop.permute.xlu0 %789
    %791 = vrot.lane.b32.xlu0 %v786, 32
    %v792 = vpop.permute.xlu0 %791
    %v795 = vadd.f32 %v765, %v790
    %v796 = vadd.f32 %v766, %v792
    %v799 = vrot.slane %v795, 4
    %v800 = vrot.slane %v796, 3
    %v801 = vsel %vm191, %v800, %v799
    %802 = vrot.lane.b32.xlu0 %v801, 64
    %v803 = vpop.permute.xlu0 %802
    %v804 = vsel %vm195, %v803, 0
    %806 = vmatprep.subr.mxu0 0.0
    %807 = vmatpush1.msra.mxu0 %v131
    %808 = vmatprep.subr.mxu0 0.0
    %809 = vmatpush1.msra.mxu0 %v132
    %810 = vmatprep.subr.mxu0 0.0
    %811 = vmatpush1.msra.mxu0 %v133
    %812 = vmatprep.subr.mxu0 0.0
    %813 = vmatpush1.msra.mxu0 %v134
    %814 = vmatprep.subr.mxu0 0.0
    %815 = vmatpush1.msra.mxu0 0.0
    %816 = vmatprep.subr.mxu0 0.0
    %817 = vmatpush1.msra.mxu0 0.0
    %818 = vmatprep.subr.mxu0 0.0
    %819 = vmatpush1.msra.mxu0 0.0
    %820 = vmatprep.subr.mxu0 0.0
    %821 = vmatpush1.msra.mxu0 0.0
    %822 = vmatprep.subr.mxu0 0.0
    %823 = vmatpush1.msra.mxu0 0.0
    %824 = vmatprep.subr.mxu0 0.0
    %825 = vmatpush1.msra.mxu0 0.0
    %826 = vmatprep.subr.mxu0 0.0
    %827 = vmatpush1.msra.mxu0 0.0
    %828 = vmatprep.subr.mxu0 0.0
    %829 = vmatpush1.msra.mxu0 0.0
    %830 = vmatprep.subr.mxu0 0.0
    %831 = vmatpush1.msra.mxu0 0.0
    %832 = vmatprep.subr.mxu0 0.0
    %833 = vmatpush1.msra.mxu0 0.0
    %834 = vmatprep.subr.mxu0 0.0
    %835 = vmatpush1.msra.mxu0 0.0
    %836 = vmatprep.subr.mxu0 0.0
    %837 = vmatpush1.msra.mxu0 0.0
    %838 = vmatprep.subr.mxu0 0.0
    %839 = vmatpush1.msra.mxu0 0.0
    %840 = vmatprep.subr.mxu0 0.0
    %841 = vmatpush1.msra.mxu0 0.0
    %842 = vmatprep.subr.mxu0 0.0
    %843 = vmatpush1.msra.mxu0 0.0
    %844 = vmatprep.subr.mxu0 0.0
    %845 = vmatpush1.msra.mxu0 0.0
    %846 = vmatprep.subr.mxu0 0.0
    %847 = vmatpush1.msra.mxu0 0.0
    %848 = vmatprep.subr.mxu0 0.0
    %849 = vmatpush1.msra.mxu0 0.0
    %850 = vmatprep.subr.mxu0 0.0
    %851 = vmatpush1.msra.mxu0 0.0
    %852 = vmatprep.subr.mxu0 0.0
    %853 = vmatpush1.msra.mxu0 0.0
    %854 = vmatprep.subr.mxu0 0.0
    %855 = vmatpush1.msra.mxu0 0.0
    %856 = vmatprep.subr.mxu0 0.0
    %857 = vmatpush1.msra.mxu0 0.0
    %858 = vmatprep.subr.mxu0 0.0
    %859 = vmatpush1.msra.mxu0 0.0
    %860 = vmatprep.subr.mxu0 0.0
    %861 = vmatpush1.msra.mxu0 0.0
    %862 = vmatprep.subr.mxu0 0.0
    %863 = vmatpush1.msra.mxu0 0.0
    %864 = vmatprep.subr.mxu0 0.0
    %865 = vmatpush1.msra.mxu0 0.0
    %866 = vmatprep.subr.mxu0 0.0
    %867 = vmatpush1.msra.mxu0 0.0
    %868 = vmatprep.subr.mxu0 0.0
    %869 = vmatpush1.msra.mxu0 0.0
    %870 = vmatprep.mubr.f32.mxu0 0.0
    %871 = vmatmul.mubr.f32.gmra.mrb[0].mxu0 %v804
    %v872 = vpop.f32.mrb[0].mxu0
    %v873 = vadd.f32 0.0, %v872
    %v874 = vpop.f32.mrb[0].mxu0
    %875 = vdwg.mxu0
    %v877 = vrot.slane %v873, 3
    %v878 = vrot.slane %v873, 4
    %v881 = vadd.f32 %v123, %v877
    %v882 = vadd.f32 %v128, %v878
    %v883 = vxor.u32 %v881, 2147483648
    %v884 = vxor.u32 %v882, 2147483648
    %v885 = vmul.f32 %v883, 1.442695
    %v886 = vpow.pop %v885
    %v887 = vmul.f32 %v884, 1.442695
    %v888 = vpow.pop %v887
    %v889 = vadd.f32 %v886, 1.0
    %v890 = vadd.f32 %v888, 1.0
    %v891 = vrcp.pop %v889
    %v892 = vmul.f32 1.0, %v891
    %v893 = vrcp.pop %v890
    %v894 = vmul.f32 1.0, %v893
    %v895 = vadd.f32 %v873, %v287
    %v897 = vrot.slane %v895, 3
    %v898 = vrot.slane %v895, 4
    %899 = vrot.lane.b32.xlu0 %v897, 64
    %v900 = vpop.permute.xlu0 %899
    %901 = vrot.lane.b32.xlu0 %v898, 64
    %v902 = vpop.permute.xlu0 %901
    %v905 = vmul.f32 %v892, %v900
    %v906 = vmul.f32 %v894, %v902
    %909 = vrot.lane.b32.xlu0 %v905, 64
    %v910 = vpop.permute.xlu0 %909
    %911 = vrot.lane.b32.xlu0 %v906, 64
    %v912 = vpop.permute.xlu0 %911
    %v915 = vadd.f32 %v123, %v910
    %v916 = vadd.f32 %v128, %v912
    %v917 = vtanh.pop %v915
    %v918 = vtanh.pop %v916
    %v921 = vrot.slane %v917, 1
    %v922 = vrot.slane %v918, 1
    %v925 = vsub.f32 %v795, %v921
    %v926 = vsub.f32 %v796, %v922
    %v929 = vrot.slane %v925, 7
    %v930 = vrot.slane %v926, 7
    %931 = vrot.lane.b32.xlu0 %v929, 96
    %v932 = vpop.permute.xlu0 %931
    %933 = vrot.lane.b32.xlu0 %v930, 96
    %v934 = vpop.permute.xlu0 %933
    %v937 = vmul.f32 %v892, %v932
    %v938 = vmul.f32 %v894, %v934
    %941 = vrot.lane.b32.xlu0 %v937, 32
    %v942 = vpop.permute.xlu0 %941
    %943 = vrot.lane.b32.xlu0 %v938, 32
    %v944 = vpop.permute.xlu0 %943
    %v947 = vadd.f32 %v917, %v942
    %v948 = vadd.f32 %v918, %v944
    %v951 = vrot.slane %v947, 5
    %v952 = vrot.slane %v948, 4
    %v953 = vsel %vm191, %v952, %v951
    %954 = vrot.lane.b32.xlu0 %v953, 64
    %v955 = vpop.permute.xlu0 %954
    %v956 = vsel %vm195, %v955, 0
    %958 = vmatprep.subr.mxu0 0.0
    %959 = vmatpush1.msra.mxu0 %v131
    %960 = vmatprep.subr.mxu0 0.0
    %961 = vmatpush1.msra.mxu0 %v132
    %962 = vmatprep.subr.mxu0 0.0
    %963 = vmatpush1.msra.mxu0 %v133
    %964 = vmatprep.subr.mxu0 0.0
    %965 = vmatpush1.msra.mxu0 %v134
    %966 = vmatprep.subr.mxu0 0.0
    %967 = vmatpush1.msra.mxu0 0.0
    %968 = vmatprep.subr.mxu0 0.0
    %969 = vmatpush1.msra.mxu0 0.0
    %970 = vmatprep.subr.mxu0 0.0
    %971 = vmatpush1.msra.mxu0 0.0
    %972 = vmatprep.subr.mxu0 0.0
    %973 = vmatpush1.msra.mxu0 0.0
    %974 = vmatprep.subr.mxu0 0.0
    %975 = vmatpush1.msra.mxu0 0.0
    %976 = vmatprep.subr.mxu0 0.0
    %977 = vmatpush1.msra.mxu0 0.0
    %978 = vmatprep.subr.mxu0 0.0
    %979 = vmatpush1.msra.mxu0 0.0
    %980 = vmatprep.subr.mxu0 0.0
    %981 = vmatpush1.msra.mxu0 0.0
    %982 = vmatprep.subr.mxu0 0.0
    %983 = vmatpush1.msra.mxu0 0.0
    %984 = vmatprep.subr.mxu0 0.0
    %985 = vmatpush1.msra.mxu0 0.0
    %986 = vmatprep.subr.mxu0 0.0
    %987 = vmatpush1.msra.mxu0 0.0
    %988 = vmatprep.subr.mxu0 0.0
    %989 = vmatpush1.msra.mxu0 0.0
    %990 = vmatprep.subr.mxu0 0.0
    %991 = vmatpush1.msra.mxu0 0.0
    %992 = vmatprep.subr.mxu0 0.0
    %993 = vmatpush1.msra.mxu0 0.0
    %994 = vmatprep.subr.mxu0 0.0
    %995 = vmatpush1.msra.mxu0 0.0
    %996 = vmatprep.subr.mxu0 0.0
    %997 = vmatpush1.msra.mxu0 0.0
    %998 = vmatprep.subr.mxu0 0.0
    %999 = vmatpush1.msra.mxu0 0.0
    %1000 = vmatprep.subr.mxu0 0.0
    %1001 = vmatpush1.msra.mxu0 0.0
    %1002 = vmatprep.subr.mxu0 0.0
    %1003 = vmatpush1.msra.mxu0 0.0
    %1004 = vmatprep.subr.mxu0 0.0
    %1005 = vmatpush1.msra.mxu0 0.0
    %1006 = vmatprep.subr.mxu0 0.0
    %1007 = vmatpush1.msra.mxu0 0.0
    %1008 = vmatprep.subr.mxu0 0.0
    %1009 = vmatpush1.msra.mxu0 0.0
    %1010 = vmatprep.subr.mxu0 0.0
    %1011 = vmatpush1.msra.mxu0 0.0
    %1012 = vmatprep.subr.mxu0 0.0
    %1013 = vmatpush1.msra.mxu0 0.0
    %1014 = vmatprep.subr.mxu0 0.0
    %1015 = vmatpush1.msra.mxu0 0.0
    %1016 = vmatprep.subr.mxu0 0.0
    %1017 = vmatpush1.msra.mxu0 0.0
    %1018 = vmatprep.subr.mxu0 0.0
    %1019 = vmatpush1.msra.mxu0 0.0
    %1020 = vmatprep.subr.mxu0 0.0
    %1021 = vmatpush1.msra.mxu0 0.0
    %1022 = vmatprep.mubr.f32.mxu0 0.0
    %1023 = vmatmul.mubr.f32.gmra.mrb[0].mxu0 %v956
    %v1024 = vpop.f32.mrb[0].mxu0
    %v1025 = vadd.f32 0.0, %v1024
    %v1026 = vpop.f32.mrb[0].mxu0
    %1027 = vdwg.mxu0
    %v1029 = vrot.slane %v1025, 2
    %v1030 = vrot.slane %v1025, 3
    %v1033 = vadd.f32 %v123, %v1029
    %v1034 = vadd.f32 %v128, %v1030
    %v1035 = vxor.u32 %v1033, 2147483648
    %v1036 = vxor.u32 %v1034, 2147483648
    %v1037 = vmul.f32 %v1035, 1.442695
    %v1038 = vpow.pop %v1037
    %v1039 = vmul.f32 %v1036, 1.442695
    %v1040 = vpow.pop %v1039
    %v1041 = vadd.f32 %v1038, 1.0
    %v1042 = vadd.f32 %v1040, 1.0
    %v1043 = vrcp.pop %v1041
    %v1044 = vmul.f32 1.0, %v1043
    %v1045 = vrcp.pop %v1042
    %v1046 = vmul.f32 1.0, %v1045
    %v1047 = vadd.f32 %v1025, %v287
    %v1049 = vrot.slane %v1047, 2
    %v1050 = vrot.slane %v1047, 3
    %1051 = vrot.lane.b32.xlu0 %v1049, 64
    %v1052 = vpop.permute.xlu0 %1051
    %1053 = vrot.lane.b32.xlu0 %v1050, 64
    %v1054 = vpop.permute.xlu0 %1053
    %v1057 = vmul.f32 %v1044, %v1052
    %v1058 = vmul.f32 %v1046, %v1054
    %1061 = vrot.lane.b32.xlu0 %v1057, 64
    %v1062 = vpop.permute.xlu0 %1061
    %1063 = vrot.lane.b32.xlu0 %v1058, 64
    %v1064 = vpop.permute.xlu0 %1063
    %v1067 = vadd.f32 %v123, %v1062
    %v1068 = vadd.f32 %v128, %v1064
    %v1069 = vtanh.pop %v1067
    %v1070 = vtanh.pop %v1068
    %v1073 = vrot.slane %v1069, 1
    %v1074 = vrot.slane %v1070, 1
    %v1077 = vsub.f32 %v947, %v1073
    %v1078 = vsub.f32 %v948, %v1074
    %v1081 = vrot.slane %v1077, 7
    %v1082 = vrot.slane %v1078, 7
    %1083 = vrot.lane.b32.xlu0 %v1081, 96
    %v1084 = vpop.permute.xlu0 %1083
    %1085 = vrot.lane.b32.xlu0 %v1082, 96
    %v1086 = vpop.permute.xlu0 %1085
    %v1089 = vmul.f32 %v1044, %v1084
    %v1090 = vmul.f32 %v1046, %v1086
    %1093 = vrot.lane.b32.xlu0 %v1089, 32
    %v1094 = vpop.permute.xlu0 %1093
    %1095 = vrot.lane.b32.xlu0 %v1090, 32
    %v1096 = vpop.permute.xlu0 %1095
    %v1099 = vadd.f32 %v1069, %v1094
    %v1100 = vadd.f32 %v1070, %v1096
    %v1103 = vrot.slane %v1099, 6
    %v1104 = vrot.slane %v1100, 5
    %v1105 = vsel %vm191, %v1104, %v1103
    %1106 = vrot.lane.b32.xlu0 %v1105, 64
    %v1107 = vpop.permute.xlu0 %1106
    %v1108 = vsel %vm195, %v1107, 0
    %1110 = vmatprep.subr.mxu0 0.0
    %1111 = vmatpush1.msra.mxu0 %v131
    %1112 = vmatprep.subr.mxu0 0.0
    %1113 = vmatpush1.msra.mxu0 %v132
    %1114 = vmatprep.subr.mxu0 0.0
    %1115 = vmatpush1.msra.mxu0 %v133
    %1116 = vmatprep.subr.mxu0 0.0
    %1117 = vmatpush1.msra.mxu0 %v134
    %1118 = vmatprep.subr.mxu0 0.0
    %1119 = vmatpush1.msra.mxu0 0.0
    %1120 = vmatprep.subr.mxu0 0.0
    %1121 = vmatpush1.msra.mxu0 0.0
    %1122 = vmatprep.subr.mxu0 0.0
    %1123 = vmatpush1.msra.mxu0 0.0
    %1124 = vmatprep.subr.mxu0 0.0
    %1125 = vmatpush1.msra.mxu0 0.0
    %1126 = vmatprep.subr.mxu0 0.0
    %1127 = vmatpush1.msra.mxu0 0.0
    %1128 = vmatprep.subr.mxu0 0.0
    %1129 = vmatpush1.msra.mxu0 0.0
    %1130 = vmatprep.subr.mxu0 0.0
    %1131 = vmatpush1.msra.mxu0 0.0
    %1132 = vmatprep.subr.mxu0 0.0
    %1133 = vmatpush1.msra.mxu0 0.0
    %1134 = vmatprep.subr.mxu0 0.0
    %1135 = vmatpush1.msra.mxu0 0.0
    %1136 = vmatprep.subr.mxu0 0.0
    %1137 = vmatpush1.msra.mxu0 0.0
    %1138 = vmatprep.subr.mxu0 0.0
    %1139 = vmatpush1.msra.mxu0 0.0
    %1140 = vmatprep.subr.mxu0 0.0
    %1141 = vmatpush1.msra.mxu0 0.0
    %1142 = vmatprep.subr.mxu0 0.0
    %1143 = vmatpush1.msra.mxu0 0.0
    %1144 = vmatprep.subr.mxu0 0.0
    %1145 = vmatpush1.msra.mxu0 0.0
    %1146 = vmatprep.subr.mxu0 0.0
    %1147 = vmatpush1.msra.mxu0 0.0
    %1148 = vmatprep.subr.mxu0 0.0
    %1149 = vmatpush1.msra.mxu0 0.0
    %1150 = vmatprep.subr.mxu0 0.0
    %1151 = vmatpush1.msra.mxu0 0.0
    %1152 = vmatprep.subr.mxu0 0.0
    %1153 = vmatpush1.msra.mxu0 0.0
    %1154 = vmatprep.subr.mxu0 0.0
    %1155 = vmatpush1.msra.mxu0 0.0
    %1156 = vmatprep.subr.mxu0 0.0
    %1157 = vmatpush1.msra.mxu0 0.0
    %1158 = vmatprep.subr.mxu0 0.0
    %1159 = vmatpush1.msra.mxu0 0.0
    %1160 = vmatprep.subr.mxu0 0.0
    %1161 = vmatpush1.msra.mxu0 0.0
    %1162 = vmatprep.subr.mxu0 0.0
    %1163 = vmatpush1.msra.mxu0 0.0
    %1164 = vmatprep.subr.mxu0 0.0
    %1165 = vmatpush1.msra.mxu0 0.0
    %1166 = vmatprep.subr.mxu0 0.0
    %1167 = vmatpush1.msra.mxu0 0.0
    %1168 = vmatprep.subr.mxu0 0.0
    %1169 = vmatpush1.msra.mxu0 0.0
    %1170 = vmatprep.subr.mxu0 0.0
    %1171 = vmatpush1.msra.mxu0 0.0
    %1172 = vmatprep.subr.mxu0 0.0
    %1173 = vmatpush1.msra.mxu0 0.0
    %1174 = vmatprep.mubr.f32.mxu0 0.0
    %1175 = vmatmul.mubr.f32.gmra.mrb[0].mxu0 %v1108
    %v1176 = vpop.f32.mrb[0].mxu0
    %v1177 = vadd.f32 0.0, %v1176
    %v1178 = vpop.f32.mrb[0].mxu0
    %1179 = vdwg.mxu0
    %v1181 = vrot.slane %v1177, 1
    %v1182 = vrot.slane %v1177, 2
    %v1185 = vadd.f32 %v123, %v1181
    %v1186 = vadd.f32 %v128, %v1182
    %v1187 = vxor.u32 %v1185, 2147483648
    %v1188 = vxor.u32 %v1186, 2147483648
    %v1189 = vmul.f32 %v1187, 1.442695
    %v1190 = vpow.pop %v1189
    %v1191 = vmul.f32 %v1188, 1.442695
    %v1192 = vpow.pop %v1191
    %v1193 = vadd.f32 %v1190, 1.0
    %v1194 = vadd.f32 %v1192, 1.0
    %v1195 = vrcp.pop %v1193
    %v1196 = vmul.f32 1.0, %v1195
    %v1197 = vrcp.pop %v1194
    %v1198 = vmul.f32 1.0, %v1197
    %v1199 = vadd.f32 %v1177, %v287
    %v1201 = vrot.slane %v1199, 1
    %v1202 = vrot.slane %v1199, 2
    %1203 = vrot.lane.b32.xlu0 %v1201, 64
    %v1204 = vpop.permute.xlu0 %1203
    %1205 = vrot.lane.b32.xlu0 %v1202, 64
    %v1206 = vpop.permute.xlu0 %1205
    %v1209 = vmul.f32 %v1196, %v1204
    %v1210 = vmul.f32 %v1198, %v1206
    %1213 = vrot.lane.b32.xlu0 %v1209, 64
    %v1214 = vpop.permute.xlu0 %1213
    %1215 = vrot.lane.b32.xlu0 %v1210, 64
    %v1216 = vpop.permute.xlu0 %1215
    %v1219 = vadd.f32 %v123, %v1214
    %v1220 = vadd.f32 %v128, %v1216
    %v1221 = vtanh.pop %v1219
    %v1222 = vtanh.pop %v1220
    %v1225 = vrot.slane %v1221, 1
    %v1226 = vrot.slane %v1222, 1
    %v1229 = vsub.f32 %v1099, %v1225
    %v1230 = vsub.f32 %v1100, %v1226
    %v1233 = vrot.slane %v1229, 7
    %v1234 = vrot.slane %v1230, 7
    %1235 = vrot.lane.b32.xlu0 %v1233, 96
    %v1236 = vpop.permute.xlu0 %1235
    %1237 = vrot.lane.b32.xlu0 %v1234, 96
    %v1238 = vpop.permute.xlu0 %1237
    %v1241 = vmul.f32 %v1196, %v1236
    %v1242 = vmul.f32 %v1198, %v1238
    %1245 = vrot.lane.b32.xlu0 %v1241, 32
    %v1246 = vpop.permute.xlu0 %1245
    %1247 = vrot.lane.b32.xlu0 %v1242, 32
    %v1248 = vpop.permute.xlu0 %1247
    %v1251 = vadd.f32 %v1221, %v1246
    %v1252 = vadd.f32 %v1222, %v1248
    %vm1253 = vcmask 1040384
    %v1254 = vsel %vm1253, %v186, %v340
    %v1255 = vsel %vm1253, %v187, %v341
    %vm1256 = vcmask 1041408
    %v1257 = vsel %vm1256, %v1254, %v491
    %v1258 = vsel %vm1256, %v1255, %v492
    %vm1259 = vcmask 1042432
    %v1260 = vsel %vm1259, %v1257, %v643
    %v1261 = vsel %vm1259, %v1258, %v644
    %v1262 = vsel %vm52, %v1260, %v795
    %v1263 = vsel %vm52, %v1261, %v796
    %vm1264 = vcmask 1044480
    %v1265 = vsel %vm1264, %v1262, %v947
    %v1266 = vsel %vm1264, %v1263, %v948
    %vm1267 = vcmask 1045504
    %v1268 = vsel %vm1267, %v1265, %v1099
    %v1269 = vsel %vm1267, %v1266, %v1100
    %vm1270 = vcmask 1046528
    %v1271 = vsel %vm1270, %v1268, %v1251
    %v1272 = vsel %vm1270, %v1269, %v1252
    %1275 = vrot.lane.b32.xlu0 %v1271, 64
    %v1276 = vpop.permute.xlu0 %1275
    %1277 = vrot.lane.b32.xlu0 %v1272, 64
    %v1278 = vpop.permute.xlu0 %1277
    %1281 = vst.msk [vmem:[#allocation5] sm:$0xff] %vm195, %v1276
    %1282 = vst.msk [vmem:[#allocation5 + $0x8] sm:$0xff] %vm195, %v1278
    // Predicated region
    $region26: #{tpu_custom_call.1} parent=1 // pred_check
      _
    $region27: #{tpu_custom_call.1} parent=1 // pred_check_branch
      %1284 = sbr.rel (0) target = $region29
    $region28: #{tpu_custom_call.1} parent=1 // pred_region
      %s1286 = ssub.s32 256, 256
      %1287 = vsyncadd [#allocation4], %s1286
      %s1288 = sshll.u32 [#allocation5], 4
      %s1289 = int_to_ptr.vmem [resolvable:$true] %s1288
      %1294 = dma.vmem_to_hbm [thread:$0]  %s1289, 256, %s5, [#allocation4], 128, 128, 8
    $region29: #{tpu_custom_call.1} parent=1 // pred_fallthru
      _
    // Predicated region
    $region30: #{tpu_custom_call.1} parent=1 // pred_check
      _
    $region31: #{tpu_custom_call.1} parent=1 // pred_check_branch
      %1296 = sbr.rel (0) target = $region33
    $region32: #{tpu_custom_call.1} parent=1 // pred_region
      %1297 = dma.done [#allocation4], 256
    $region33: #{tpu_custom_call.1} parent=1 // pred_fallthru
      _
    %1298 = vsyncpa [#allocation3], 1
    %1299 = vsyncpa [#allocation4], 1

</llo_original>
